<compile_context>
chip_gen: v7x
topology: tpu7x:2x2x1
jax: 0.10.0
libtpu: 0.0.40
codegen_flags: <defaults>
</compile_context>

<pallas_src>
import functools

import jax
import jax.numpy as jnp
from jax.experimental import pallas as pl
from jax.experimental.pallas import tpu as pltpu


def _round_up(x, m):
    return ((x + m - 1) // m) * m


def _choose_batch_tile(requested, b, hw, c, bneck, ncls, act_bytes,
                       vmem_budget=48 * 1024 * 1024):
    """Largest 8-aligned batch tile that fits the VMEM budget (v7x-safe)."""
    # Resident weights/biases (assume worst-case double buffering by the pipeline).
    weight_bytes = 2 * ((c * bneck + bneck * ncls) * act_bytes + (bneck + ncls) * 4)
    # Per-batch-row: double-buffered input tile, its f32 upcast used by the pooling
    # reduction, double-buffered f32 output tiles, and f32 intermediates.
    per_row = (hw * c * (2 * act_bytes + 4)
               + 2 * (bneck + ncls) * 4
               + (c + bneck + ncls) * 4)
    fit = max(8, (vmem_budget - weight_bytes) // per_row)
    bt = min(int(requested), _round_up(b, 8), int(fit))
    bt = max(8, (bt // 8) * 8)          # sublane alignment for 2-D output blocks
    return bt


def _resnetfc_head_kernel(x_ref, wb_ref, bb_ref, wfc_ref, bfc_ref,
                          feat_ref, y_ref, *, cos_dist, scale_factor):
    """x_ref: [bt, H*W, C] layer4 feature tile (channels on the lane axis)."""
    compute_dtype = wb_ref.dtype

    # --- avgpool + flatten: mean over the spatial axis, accumulated in f32 ---
    pooled = jnp.mean(x_ref[...].astype(jnp.float32), axis=1)            # [bt, C]

    # --- bottleneck Linear: bf16 operands on the MXU, f32 accumulation ---
    feat = jnp.dot(pooled.astype(compute_dtype), wb_ref[...],
                   preferred_element_type=jnp.float32) + bb_ref[...]     # [bt, Dbn]

    if cos_dist:
        # x = x / (||x||_2 + 1e-5), f32 (matches torch.norm(p=2, dim=1) path)
        norm = jnp.sqrt(jnp.sum(feat * feat, axis=-1, keepdims=True))
        feat = feat / (norm + 1e-5)

    feat_ref[...] = feat.astype(feat_ref.dtype)

    # --- fc (Linear) or distLinear (weight-normed, no bias, scale 10) ---
    logits = jnp.dot(feat.astype(compute_dtype), wfc_ref[...],
                     preferred_element_type=jnp.float32)                 # [bt, ncls]
    if cos_dist:
        logits = scale_factor * logits
    else:
        logits = logits + bfc_ref[...]
    y_ref[...] = logits.astype(y_ref.dtype)


def distlinear_effective_weight(v, g):
    """WeightNorm(dim=0) reparam of distLinear's weight, in [in, out] layout.

    PyTorch normalises each output row of L.weight; here that is each column of v.
    At init g equals the column norms, so the effective weight equals v.
    """
    col_norm = jnp.sqrt(jnp.sum(v * v, axis=0, keepdims=True))
    return v * (g[None, :] / col_norm)


def resnetfc_head_forward(feature_map, w_b, b_b, w_fc, b_fc, *,
                          cos_dist=False, scale_factor=10.0,
                          batch_tile=512, compute_dtype=jnp.bfloat16):
    """Fused ResNetFc head. Returns (features, logits) like the module's (x, y).

    feature_map : [B, C, H, W]  (layer4 output, NCHW like PyTorch)
    w_b  : [C, bottleneck_dim]        b_b  : [1, bottleneck_dim]
    w_fc : [bottleneck_dim, class_num] b_fc: [1, class_num] (ignored if cos_dist)
    """
    B, C, H, W = feature_map.shape
    HW = H * W
    bneck = w_b.shape[1]
    ncls = w_fc.shape[1]

    # Layout plumbing in the wrapper: channels on the lane axis, spatial as sublanes.
    x = jnp.transpose(feature_map, (0, 2, 3, 1)).reshape(B, HW, C)

    act_bytes = jnp.dtype(compute_dtype).itemsize
    bt = _choose_batch_tile(batch_tile, B, HW, C, bneck, ncls, act_bytes)
    b_pad = _round_up(B, bt)
    if b_pad != B:                       # handle ragged batches by zero-padding
        x = jnp.pad(x, ((0, b_pad - B), (0, 0), (0, 0)))

    # Cast streaming input and weights ONCE outside the kernel (halves HBM/VMEM
    # traffic; avoids per-op bf16 casts in the VPU hot path — matters on v5e).
    x = x.astype(compute_dtype)
    w_b = w_b.astype(compute_dtype)
    w_fc = w_fc.astype(compute_dtype)
    b_b = b_b.astype(jnp.float32)
    b_fc = b_fc.astype(jnp.float32)

    grid = (b_pad // bt,)

    flops = 2 * b_pad * (C * bneck + bneck * ncls) + b_pad * HW * C
    bytes_accessed = (x.size * act_bytes
                      + (w_b.size + w_fc.size) * act_bytes
                      + (b_b.size + b_fc.size) * 4
                      + b_pad * (bneck + ncls) * 4)
    cost = pl.CostEstimate(flops=int(flops),
                           transcendentals=int(b_pad) if cos_dist else 0,
                           bytes_accessed=int(bytes_accessed))

    kernel = functools.partial(_resnetfc_head_kernel,
                               cos_dist=bool(cos_dist),
                               scale_factor=float(scale_factor))

    feat, y = pl.pallas_call(
        kernel,
        out_shape=(jax.ShapeDtypeStruct((b_pad, bneck), jnp.float32),
                   jax.ShapeDtypeStruct((b_pad, ncls), jnp.float32)),
        grid_spec=pltpu.PrefetchScalarGridSpec(
            num_scalar_prefetch=0,
            grid=grid,
            in_specs=[
                pl.BlockSpec((bt, HW, C), lambda i: (i, 0, 0)),   # streamed x tile
                pl.BlockSpec((C, bneck), lambda i: (0, 0)),       # W_bottleneck (resident)
                pl.BlockSpec((1, bneck), lambda i: (0, 0)),       # b_bottleneck
                pl.BlockSpec((bneck, ncls), lambda i: (0, 0)),    # W_fc (resident)
                pl.BlockSpec((1, ncls), lambda i: (0, 0)),        # b_fc
            ],
            out_specs=(
                pl.BlockSpec((bt, bneck), lambda i: (i, 0)),      # features (lane-dense)
                pl.BlockSpec((bt, ncls), lambda i: (i, 0)),       # logits   (lane-dense)
            ),
        ),
        compiler_params=pltpu.CompilerParams(
            dimension_semantics=("parallel",),     # batch tiles megacore-shard on v7x
            vmem_limit_bytes=64 * 1024 * 1024,
        ),
        cost_estimate=cost,
    )(x, w_b, b_b, w_fc, b_fc)

    return feat[:B], y[:B]


def _reference(feature_map, w_b, b_b, w_fc, b_fc, cos_dist,
               compute_dtype=jnp.bfloat16, scale_factor=10.0):
    """Pure-JAX reference mirroring the kernel's bf16-operand / f32-accum math."""
    B, C, H, W = feature_map.shape
    x = jnp.transpose(feature_map, (0, 2, 3, 1)).reshape(B, H * W, C)
    pooled = jnp.mean(x.astype(compute_dtype).astype(jnp.float32), axis=1)
    feat = jnp.dot(pooled.astype(compute_dtype), w_b.astype(compute_dtype),
                   preferred_element_type=jnp.float32) + b_b
    if cos_dist:
        n = jnp.sqrt(jnp.sum(feat * feat, axis=-1, keepdims=True))
        feat = feat / (n + 1e-5)
        y = scale_factor * jnp.dot(feat.astype(compute_dtype),
                                   w_fc.astype(compute_dtype),
                                   preferred_element_type=jnp.float32)
    else:
        y = jnp.dot(feat.astype(compute_dtype), w_fc.astype(compute_dtype),
                    preferred_element_type=jnp.float32) + b_fc
    return feat, y


if __name__ == "__main__":
    key = jax.random.PRNGKey(0)
    k_x, k_b, k_fc = jax.random.split(key, 3)

    # Small stand-in for a ResNet18/34 layer4 output: [B, 512, 7, 7].
    B, C, H, W = 8, 512, 7, 7
    BOTTLENECK, CLASS_NUM = 256, 128

    feature_map = jax.random.normal(k_x, (B, C, H, W), dtype=jnp.float32)

    def xavier(k, fan_in, fan_out):           # init_weights: xavier_normal_, zero bias
        std = (2.0 / (fan_in + fan_out)) ** 0.5
        return std * jax.random.normal(k, (fan_in, fan_out), dtype=jnp.float32)

    w_b = xavier(k_b, C, BOTTLENECK)
    b_b = jnp.zeros((1, BOTTLENECK), jnp.float32)
    w_fc = xavier(k_fc, BOTTLENECK, CLASS_NUM)
    b_fc = jnp.zeros((1, CLASS_NUM), jnp.float32)

    # --- default config: new_cls=True, use_bottleneck=True, cos_dist=False ---
    feat, y = resnetfc_head_forward(feature_map, w_b, b_b, w_fc, b_fc,
                                    cos_dist=False)
    feat, y = jax.block_until_ready((feat, y))
    feat_ref, y_ref = _reference(feature_map, w_b, b_b, w_fc, b_fc, False)
    assert feat.shape == (B, BOTTLENECK) and y.shape == (B, CLASS_NUM)
    assert jnp.allclose(feat, feat_ref, atol=2e-3, rtol=2e-3)
    assert jnp.allclose(y, y_ref, atol=2e-3, rtol=2e-3)

    # --- cos_dist config: distLinear head (weight-normalised, no bias, scale 10) ---
    g = jnp.sqrt(jnp.sum(w_fc * w_fc, axis=0))        # WeightNorm g at init
    w_fc_eff = distlinear_effective_weight(w_fc, g)
    feat_c, y_c = resnetfc_head_forward(feature_map, w_b, b_b, w_fc_eff, b_fc,
                                        cos_dist=True)
    feat_c, y_c = jax.block_until_ready((feat_c, y_c))
    feat_cr, y_cr = _reference(feature_map, w_b, b_b, w_fc_eff, b_fc, True)
    assert jnp.allclose(feat_c, feat_cr, atol=2e-3, rtol=2e-3)
    assert jnp.allclose(y_c, y_cr, atol=2e-3, rtol=2e-3)

    print("KERNEL_OK")
</pallas_src>

<mosaic_0001>
module attributes {stable_mosaic.version = 11 : i64} {
  func.func @_resnetfc_head_kernel(%arg0: i32, %arg1: memref<8x49x512xbf16, #tpu.memory_space<vmem>>, %arg2: memref<512x256xbf16, #tpu.memory_space<vmem>>, %arg3: memref<1x256xf32, #tpu.memory_space<vmem>>, %arg4: memref<256x128xbf16, #tpu.memory_space<vmem>>, %arg5: memref<1x128xf32, #tpu.memory_space<vmem>>, %arg6: memref<8x256xf32, #tpu.memory_space<vmem>>, %arg7: memref<8x128xf32, #tpu.memory_space<vmem>>) attributes {dimension_semantics = [#tpu.dimension_semantics<parallel>], iteration_bounds = array<i64: 1>, scalar_prefetch = 0 : i64, scratch_operands = 0 : i64, tpu.core_type = #tpu.core_type<tc>, window_params = [{transform_indices = @transform_0, window_bounds = array<i64: 8, 49, 512>}, {pipeline_mode = #tpu.pipeline_mode<synchronous>, transform_indices = @transform_1, window_bounds = array<i64: 512, 256>}, {pipeline_mode = #tpu.pipeline_mode<synchronous>, transform_indices = @transform_2, window_bounds = array<i64: 1, 256>}, {pipeline_mode = #tpu.pipeline_mode<synchronous>, transform_indices = @transform_3, window_bounds = array<i64: 256, 128>}, {pipeline_mode = #tpu.pipeline_mode<synchronous>, transform_indices = @transform_4, window_bounds = array<i64: 1, 128>}, {transform_indices = @transform_5, window_bounds = array<i64: 8, 256>}, {transform_indices = @transform_6, window_bounds = array<i64: 8, 128>}]} {
    %c0 = arith.constant 0 : index
    %c0_0 = arith.constant 0 : index
    %c0_1 = arith.constant 0 : index
    %0 = vector.load %arg1[%c0, %c0_0, %c0_1] : memref<8x49x512xbf16, #tpu.memory_space<vmem>>, vector<8x49x512xbf16>
    %1 = arith.extf %0 : vector<8x49x512xbf16> to vector<8x49x512xf32>
    %cst = arith.constant dense<0.000000e+00> : vector<8x512xf32>
    %2 = vector.multi_reduction <add>, %1, %cst [1] : vector<8x49x512xf32> to vector<8x512xf32>
    %cst_2 = arith.constant 4.900000e+01 : f32
    %3 = vector.broadcast %cst_2 : f32 to vector<8x512xf32>
    %4 = arith.divf %2, %3 : vector<8x512xf32>
    %5 = arith.truncf %4 : vector<8x512xf32> to vector<8x512xbf16>
    %c0_3 = arith.constant 0 : index
    %c0_4 = arith.constant 0 : index
    %6 = vector.load %arg2[%c0_3, %c0_4] : memref<512x256xbf16, #tpu.memory_space<vmem>>, vector<512x256xbf16>
    %cst_5 = arith.constant dense<0.000000e+00> : vector<8x256xf32>
    %7 = tpu.matmul %5, %6, %cst_5 {dimension_numbers = #tpu.dot_dimension_numbers<[1], [0], [0], [1], [0, 0, 1, 1], [], []>} : vector<8x512xbf16>, vector<512x256xbf16>, vector<8x256xf32> -> vector<8x256xf32>
    %c0_6 = arith.constant 0 : index
    %c0_7 = arith.constant 0 : index
    %8 = vector.load %arg3[%c0_6, %c0_7] : memref<1x256xf32, #tpu.memory_space<vmem>>, vector<1x256xf32>
    %9 = vector.broadcast %8 : vector<1x256xf32> to vector<8x256xf32>
    %10 = arith.addf %7, %9 : vector<8x256xf32>
    %c0_8 = arith.constant 0 : index
    %c0_9 = arith.constant 0 : index
    %11 = vector.load %arg6[%c0_8, %c0_9] : memref<8x256xf32, #tpu.memory_space<vmem>>, vector<8x256xf32>
    tpu.vector_store %arg6[%c0_8, %c0_9], %10 {strides = array<i32>} : memref<8x256xf32, #tpu.memory_space<vmem>>, vector<8x256xf32>,
    %12 = arith.truncf %10 : vector<8x256xf32> to vector<8x256xbf16>
    %c0_10 = arith.constant 0 : index
    %c0_11 = arith.constant 0 : index
    %13 = vector.load %arg4[%c0_10, %c0_11] : memref<256x128xbf16, #tpu.memory_space<vmem>>, vector<256x128xbf16>
    %cst_12 = arith.constant dense<0.000000e+00> : vector<8x128xf32>
    %14 = tpu.matmul %12, %13, %cst_12 {dimension_numbers = #tpu.dot_dimension_numbers<[1], [0], [0], [1], [0, 0, 1, 1], [], []>} : vector<8x256xbf16>, vector<256x128xbf16>, vector<8x128xf32> -> vector<8x128xf32>
    %c0_13 = arith.constant 0 : index
    %c0_14 = arith.constant 0 : index
    %15 = vector.load %arg5[%c0_13, %c0_14] : memref<1x128xf32, #tpu.memory_space<vmem>>, vector<1x128xf32>
    %16 = vector.broadcast %15 : vector<1x128xf32> to vector<8x128xf32>
    %17 = arith.addf %14, %16 : vector<8x128xf32>
    %c0_15 = arith.constant 0 : index
    %c0_16 = arith.constant 0 : index
    %18 = vector.load %arg7[%c0_15, %c0_16] : memref<8x128xf32, #tpu.memory_space<vmem>>, vector<8x128xf32>
    tpu.vector_store %arg7[%c0_15, %c0_16], %17 {strides = array<i32>} : memref<8x128xf32, #tpu.memory_space<vmem>>, vector<8x128xf32>,
    return
  }
  func.func @transform_0(%arg0: i32) -> (i32, i32, i32) {
    %c0_i32 = arith.constant 0 : i32
    %c0_i32_0 = arith.constant 0 : i32
    %c0_i32_1 = arith.constant 0 : i32
    return %arg0, %c0_i32, %c0_i32_0 : i32, i32, i32
  }
  func.func @transform_1(%arg0: i32) -> (i32, i32) {
    %c0_i32 = arith.constant 0 : i32
    %c0_i32_0 = arith.constant 0 : i32
    %c0_i32_1 = arith.constant 0 : i32
    return %c0_i32, %c0_i32_0 : i32, i32
  }
  func.func @transform_2(%arg0: i32) -> (i32, i32) {
    %c0_i32 = arith.constant 0 : i32
    %c0_i32_0 = arith.constant 0 : i32
    %c0_i32_1 = arith.constant 0 : i32
    return %c0_i32, %c0_i32_0 : i32, i32
  }
  func.func @transform_3(%arg0: i32) -> (i32, i32) {
    %c0_i32 = arith.constant 0 : i32
    %c0_i32_0 = arith.constant 0 : i32
    %c0_i32_1 = arith.constant 0 : i32
    return %c0_i32, %c0_i32_0 : i32, i32
  }
  func.func @transform_4(%arg0: i32) -> (i32, i32) {
    %c0_i32 = arith.constant 0 : i32
    %c0_i32_0 = arith.constant 0 : i32
    %c0_i32_1 = arith.constant 0 : i32
    return %c0_i32, %c0_i32_0 : i32, i32
  }
  func.func @transform_5(%arg0: i32) -> (i32, i32) {
    %c0_i32 = arith.constant 0 : i32
    %c0_i32_0 = arith.constant 0 : i32
    return %arg0, %c0_i32 : i32, i32
  }
  func.func @transform_6(%arg0: i32) -> (i32, i32) {
    %c0_i32 = arith.constant 0 : i32
    %c0_i32_0 = arith.constant 0 : i32
    return %arg0, %c0_i32 : i32, i32
  }
}

</mosaic_0001>

<llo_original>
// kernel: tpu_custom_call.1
$region0: #{tpu_custom_call.1}
  #allocation0 [shape = 'u32[]', space=smem, size = 0x4, offset = 0x4, fixed_abs, tag = 'smem constant byte address 0x4 - core index']
  #allocation1 [shape = 'u32[144,128]{1,0:T(1,128)}', space=vmem, size = 0x12000, scoped, tag = 'internal scratch']
  %s0 = inlined_call_operand.hbm [shape: bf16[8,49,512], index: 0, kind: input, shape index: {}]
  %s1 = inlined_call_operand.hbm [shape: bf16[512,256], index: 1, kind: input, shape index: {}]
  %s2 = inlined_call_operand.hbm [shape: f32[1,256], index: 2, kind: input, shape index: {}]
  %s3 = inlined_call_operand.hbm [shape: bf16[256,128], index: 3, kind: input, shape index: {}]
  %s4 = inlined_call_operand.hbm [shape: f32[1,128], index: 4, kind: input, shape index: {}]
  %s5 = inlined_call_operand.hbm [shape: f32[8,256], index: 5, kind: output, shape index: {0}]
  %s6 = inlined_call_operand.hbm [shape: f32[8,128], index: 6, kind: output, shape index: {1}]
  %7 = xla_tuple %s5, %s6
  %s8 = sld [smem:[#allocation0]]
  $region58: #{tpu_custom_call.1} parent=0
    _
  %s10 = ssub.s32 1, %s8
  %s11 = scalar_select 0, %s10, %s8
  $region1: #{tpu_custom_call.1} parent=0
    #allocation2 [shape = 'u8[458752]{0}', space=vmem, size = 0x70000, scoped, tag = 'input window, operand 0, single buffered']
    #allocation3 [shape = 's32[1]{0}', space=sflag, size = 0x4, scoped, tag = 'scoped memory for tpu_custom_call.1']
    #allocation4 [shape = 's32[1]{0}', space=sflag, size = 0x4, scoped, tag = 'scoped memory for tpu_custom_call.1']
    #allocation5 [shape = 'u8[262144]{0}', space=vmem, size = 0x40000, scoped, tag = 'input window, operand 1, single buffered']
    #allocation6 [shape = 's32[1]{0}', space=sflag, size = 0x4, scoped, tag = 'scoped memory for tpu_custom_call.1']
    #allocation7 [shape = 'u8[1024]{0}', space=vmem, size = 0x400, scoped, tag = 'input window, operand 2, single buffered']
    #allocation8 [shape = 'u8[65536]{0}', space=vmem, size = 0x10000, scoped, tag = 'input window, operand 3, single buffered']
    #allocation9 [shape = 's32[1]{0}', space=sflag, size = 0x4, scoped, tag = 'scoped memory for tpu_custom_call.1']
    #allocation10 [shape = 'u8[512]{0}', space=vmem, size = 0x400, scoped, tag = 'input window, operand 4, single buffered']
    #allocation11 [shape = 'u8[8192]{0}', space=vmem, size = 0x2000, scoped, tag = 'output window, operand 0, single buffered']
    #allocation12 [shape = 'u8[4096]{0}', space=vmem, size = 0x1000, scoped, tag = 'output window, operand 1, single buffered']
    #allocation13 [shape = 's32[1]{0}', space=sflag, size = 0x4, scoped, tag = 'scoped memory for tpu_custom_call.1']
    %12 = vsyncpa [#allocation3], 0
    %13 = vsyncpa [#allocation6], 0
    %14 = vsyncpa [#allocation9], 0
    %15 = vsyncpa [#allocation4], 0
    %16 = vsyncpa [#allocation13], 0
    // Predicated region
    $region2: #{tpu_custom_call.1} parent=1 // pred_check
      _
    $region3: #{tpu_custom_call.1} parent=1 // pred_check_branch
      %18 = sbr.rel (0) target = $region5
    $region4: #{tpu_custom_call.1} parent=1 // pred_region
      %s20 = ssub.s32 14336, 14336
      %21 = vsyncadd [#allocation3], %s20
      %s22 = sshll.u32 [#allocation2], 4
      %s23 = int_to_ptr.vmem [resolvable:$true] %s22
      %28 = dma.hbm_to_vmem [thread:$0]  %s0, 14336, %s23, [#allocation3], 256, 256, 16
    $region5: #{tpu_custom_call.1} parent=1 // pred_fallthru
      _
    // Predicated region
    $region6: #{tpu_custom_call.1} parent=1 // pred_check
      _
    $region7: #{tpu_custom_call.1} parent=1 // pred_check_branch
      %30 = sbr.rel (0) target = $region9
    $region8: #{tpu_custom_call.1} parent=1 // pred_region
      %s32 = ssub.s32 8192, 8192
      %33 = vsyncadd [#allocation6], %s32
      %s34 = sshll.u32 [#allocation5], 4
      %s35 = int_to_ptr.vmem [resolvable:$true] %s34
      %40 = dma.hbm_to_vmem [thread:$0]  %s1, 8192, %s35, [#allocation6], 128, 128, 8
    $region9: #{tpu_custom_call.1} parent=1 // pred_fallthru
      _
    // Predicated region
    $region10: #{tpu_custom_call.1} parent=1 // pred_check
      _
    $region11: #{tpu_custom_call.1} parent=1 // pred_check_branch
      %42 = sbr.rel (0) target = $region13
    $region12: #{tpu_custom_call.1} parent=1 // pred_region
      %s44 = ssub.s32 32, 32
      %45 = vsyncadd [#allocation6], %s44
      %s47 = sshll.u32 [#allocation7], 4
      %s48 = int_to_ptr.vmem [resolvable:$true] %s47
      %50 = dma.hbm_to_vmem [thread:$0]  %s2, 32, %s48, [#allocation6]
    $region13: #{tpu_custom_call.1} parent=1 // pred_fallthru
      _
    // Predicated region
    $region14: #{tpu_custom_call.1} parent=1 // pred_check
      _
    $region15: #{tpu_custom_call.1} parent=1 // pred_check_branch
      %52 = sbr.rel (0) target = $region17
    $region16: #{tpu_custom_call.1} parent=1 // pred_region
      %s54 = ssub.s32 2048, 2048
      %55 = vsyncadd [#allocation9], %s54
      %s56 = sshll.u32 [#allocation8], 4
      %s57 = int_to_ptr.vmem [resolvable:$true] %s56
      %62 = dma.hbm_to_vmem [thread:$0]  %s3, 2048, %s57, [#allocation9], 64, 64, 4
    $region17: #{tpu_custom_call.1} parent=1 // pred_fallthru
      _
    // Predicated region
    $region18: #{tpu_custom_call.1} parent=1 // pred_check
      _
    $region19: #{tpu_custom_call.1} parent=1 // pred_check_branch
      %64 = sbr.rel (0) target = $region21
    $region20: #{tpu_custom_call.1} parent=1 // pred_region
      %s66 = ssub.s32 16, 16
      %67 = vsyncadd [#allocation9], %s66
      %s69 = sshll.u32 [#allocation10], 4
      %s70 = int_to_ptr.vmem [resolvable:$true] %s69
      %72 = dma.hbm_to_vmem [thread:$0]  %s4, 16, %s70, [#allocation9]
    $region21: #{tpu_custom_call.1} parent=1 // pred_fallthru
      _
    // Predicated region
    $region22: #{tpu_custom_call.1} parent=1 // pred_check
      _
    $region23: #{tpu_custom_call.1} parent=1 // pred_check_branch
      %74 = sbr.rel (0) target = $region25
    $region24: #{tpu_custom_call.1} parent=1 // pred_region
      %75 = dma.done [#allocation3], 14336
    $region25: #{tpu_custom_call.1} parent=1 // pred_fallthru
      _
    // Predicated region
    $region26: #{tpu_custom_call.1} parent=1 // pred_check
      _
    $region27: #{tpu_custom_call.1} parent=1 // pred_check_branch
      %77 = sbr.rel (0) target = $region29
    $region28: #{tpu_custom_call.1} parent=1 // pred_region
      %78 = dma.done [#allocation6], 8192
    $region29: #{tpu_custom_call.1} parent=1 // pred_fallthru
      _
    // Predicated region
    $region30: #{tpu_custom_call.1} parent=1 // pred_check
      _
    $region31: #{tpu_custom_call.1} parent=1 // pred_check_branch
      %80 = sbr.rel (0) target = $region33
    $region32: #{tpu_custom_call.1} parent=1 // pred_region
      %81 = dma.done [#allocation6], 32
    $region33: #{tpu_custom_call.1} parent=1 // pred_fallthru
      _
    // Predicated region
    $region34: #{tpu_custom_call.1} parent=1 // pred_check
      _
    $region35: #{tpu_custom_call.1} parent=1 // pred_check_branch
      %83 = sbr.rel (0) target = $region37
    $region36: #{tpu_custom_call.1} parent=1 // pred_region
      %84 = dma.done [#allocation9], 2048
    $region37: #{tpu_custom_call.1} parent=1 // pred_fallthru
      _
    // Predicated region
    $region38: #{tpu_custom_call.1} parent=1 // pred_check
      _
    $region39: #{tpu_custom_call.1} parent=1 // pred_check_branch
      %86 = sbr.rel (0) target = $region41
    $region40: #{tpu_custom_call.1} parent=1 // pred_region
      %87 = dma.done [#allocation9], 16
    $region41: #{tpu_custom_call.1} parent=1 // pred_fallthru
      _
    %v89 = vld [vmem:[#allocation2] sm:$0xff]
    %v90 = vld [vmem:[#allocation2 + $0x8] sm:$0xff]
    %v91 = vld [vmem:[#allocation2 + $0x10] sm:$0xff]
    %v92 = vld [vmem:[#allocation2 + $0x18] sm:$0xff]
    %v93 = vld [vmem:[#allocation2 + $0x20] sm:$0xff]
    %v94 = vld [vmem:[#allocation2 + $0x28] sm:$0xff]
    %v95 = vld [vmem:[#allocation2 + $0x30] sm:$0xff]
    %v96 = vld [vmem:[#allocation2 + $0x38] sm:$0xff]
    %v97 = vld [vmem:[#allocation2 + $0x40] sm:$0xff]
    %v98 = vld [vmem:[#allocation2 + $0x48] sm:$0xff]
    %v99 = vld [vmem:[#allocation2 + $0x50] sm:$0xff]
    %v100 = vld [vmem:[#allocation2 + $0x58] sm:$0xff]
    %v101 = vld [vmem:[#allocation2 + $0x60] sm:$0x11]
    %v102 = vld [vmem:[#allocation2 + $0x68] sm:$0x11]
    %v103 = vld [vmem:[#allocation2 + $0x70] sm:$0xff]
    %v104 = vld [vmem:[#allocation2 + $0x78] sm:$0xff]
    %v105 = vld [vmem:[#allocation2 + $0x80] sm:$0xff]
    %v106 = vld [vmem:[#allocation2 + $0x88] sm:$0xff]
    %v107 = vld [vmem:[#allocation2 + $0x90] sm:$0xff]
    %v108 = vld [vmem:[#allocation2 + $0x98] sm:$0xff]
    %v109 = vld [vmem:[#allocation2 + $0xa0] sm:$0xff]
    %v110 = vld [vmem:[#allocation2 + $0xa8] sm:$0xff]
    %v111 = vld [vmem:[#allocation2 + $0xb0] sm:$0xff]
    %v112 = vld [vmem:[#allocation2 + $0xb8] sm:$0xff]
    %v113 = vld [vmem:[#allocation2 + $0xc0] sm:$0xff]
    %v114 = vld [vmem:[#allocation2 + $0xc8] sm:$0xff]
    %v115 = vld [vmem:[#allocation2 + $0xd0] sm:$0x11]
    %v116 = vld [vmem:[#allocation2 + $0xd8] sm:$0x11]
    %v117 = vld [vmem:[#allocation2 + $0xe0] sm:$0xff]
    %v118 = vld [vmem:[#allocation2 + $0xe8] sm:$0xff]
    %v119 = vld [vmem:[#allocation2 + $0xf0] sm:$0xff]
    %v120 = vld [vmem:[#allocation2 + $0xf8] sm:$0xff]
    %v121 = vld [vmem:[#allocation2 + $0x100] sm:$0xff]
    %v122 = vld [vmem:[#allocation2 + $0x108] sm:$0xff]
    %v123 = vld [vmem:[#allocation2 + $0x110] sm:$0xff]
    %v124 = vld [vmem:[#allocation2 + $0x118] sm:$0xff]
    %v125 = vld [vmem:[#allocation2 + $0x120] sm:$0xff]
    %v126 = vld [vmem:[#allocation2 + $0x128] sm:$0xff]
    %v127 = vld [vmem:[#allocation2 + $0x130] sm:$0xff]
    %v128 = vld [vmem:[#allocation2 + $0x138] sm:$0xff]
    %v129 = vld [vmem:[#allocation2 + $0x140] sm:$0x11]
    %v130 = vld [vmem:[#allocation2 + $0x148] sm:$0x11]
    %v131 = vld [vmem:[#allocation2 + $0x150] sm:$0xff]
    %v132 = vld [vmem:[#allocation2 + $0x158] sm:$0xff]
    %v133 = vld [vmem:[#allocation2 + $0x160] sm:$0xff]
    %v134 = vld [vmem:[#allocation2 + $0x168] sm:$0xff]
    %v135 = vld [vmem:[#allocation2 + $0x170] sm:$0xff]
    %v136 = vld [vmem:[#allocation2 + $0x178] sm:$0xff]
    %v137 = vld [vmem:[#allocation2 + $0x180] sm:$0xff]
    %v138 = vld [vmem:[#allocation2 + $0x188] sm:$0xff]
    %v139 = vld [vmem:[#allocation2 + $0x190] sm:$0xff]
    %v140 = vld [vmem:[#allocation2 + $0x198] sm:$0xff]
    %v141 = vld [vmem:[#allocation2 + $0x1a0] sm:$0xff]
    %v142 = vld [vmem:[#allocation2 + $0x1a8] sm:$0xff]
    %v143 = vld [vmem:[#allocation2 + $0x1b0] sm:$0x11]
    %v144 = vld [vmem:[#allocation2 + $0x1b8] sm:$0x11]
    %v145 = vld [vmem:[#allocation2 + $0x1c0] sm:$0xff]
    %v146 = vld [vmem:[#allocation2 + $0x1c8] sm:$0xff]
    %v147 = vld [vmem:[#allocation2 + $0x1d0] sm:$0xff]
    %v148 = vld [vmem:[#allocation2 + $0x1d8] sm:$0xff]
    %v149 = vld [vmem:[#allocation2 + $0x1e0] sm:$0xff]
    %v150 = vld [vmem:[#allocation2 + $0x1e8] sm:$0xff]
    %v151 = vld [vmem:[#allocation2 + $0x1f0] sm:$0xff]
    %v152 = vld [vmem:[#allocation2 + $0x1f8] sm:$0xff]
    %v153 = vld [vmem:[#allocation2 + $0x200] sm:$0xff]
    %v154 = vld [vmem:[#allocation2 + $0x208] sm:$0xff]
    %v155 = vld [vmem:[#allocation2 + $0x210] sm:$0xff]
    %v156 = vld [vmem:[#allocation2 + $0x218] sm:$0xff]
    %v157 = vld [vmem:[#allocation2 + $0x220] sm:$0x11]
    %v158 = vld [vmem:[#allocation2 + $0x228] sm:$0x11]
    %v159 = vld [vmem:[#allocation2 + $0x230] sm:$0xff]
    %v160 = vld [vmem:[#allocation2 + $0x238] sm:$0xff]
    %v161 = vld [vmem:[#allocation2 + $0x240] sm:$0xff]
    %v162 = vld [vmem:[#allocation2 + $0x248] sm:$0xff]
    %v163 = vld [vmem:[#allocation2 + $0x250] sm:$0xff]
    %v164 = vld [vmem:[#allocation2 + $0x258] sm:$0xff]
    %v165 = vld [vmem:[#allocation2 + $0x260] sm:$0xff]
    %v166 = vld [vmem:[#allocation2 + $0x268] sm:$0xff]
    %v167 = vld [vmem:[#allocation2 + $0x270] sm:$0xff]
    %v168 = vld [vmem:[#allocation2 + $0x278] sm:$0xff]
    %v169 = vld [vmem:[#allocation2 + $0x280] sm:$0xff]
    %v170 = vld [vmem:[#allocation2 + $0x288] sm:$0xff]
    %v171 = vld [vmem:[#allocation2 + $0x290] sm:$0x11]
    %v172 = vld [vmem:[#allocation2 + $0x298] sm:$0x11]
    %v173 = vld [vmem:[#allocation2 + $0x2a0] sm:$0xff]
    %v174 = vld [vmem:[#allocation2 + $0x2a8] sm:$0xff]
    %v175 = vld [vmem:[#allocation2 + $0x2b0] sm:$0xff]
    %v176 = vld [vmem:[#allocation2 + $0x2b8] sm:$0xff]
    %v177 = vld [vmem:[#allocation2 + $0x2c0] sm:$0xff]
    %v178 = vld [vmem:[#allocation2 + $0x2c8] sm:$0xff]
    %v179 = vld [vmem:[#allocation2 + $0x2d0] sm:$0xff]
    %v180 = vld [vmem:[#allocation2 + $0x2d8] sm:$0xff]
    %v181 = vld [vmem:[#allocation2 + $0x2e0] sm:$0xff]
    %v182 = vld [vmem:[#allocation2 + $0x2e8] sm:$0xff]
    %v183 = vld [vmem:[#allocation2 + $0x2f0] sm:$0xff]
    %v184 = vld [vmem:[#allocation2 + $0x2f8] sm:$0xff]
    %v185 = vld [vmem:[#allocation2 + $0x300] sm:$0x11]
    %v186 = vld [vmem:[#allocation2 + $0x308] sm:$0x11]
    %v187 = vld [vmem:[#allocation2 + $0x310] sm:$0xff]
    %v188 = vld [vmem:[#allocation2 + $0x318] sm:$0xff]
    %v189 = vld [vmem:[#allocation2 + $0x320] sm:$0xff]
    %v190 = vld [vmem:[#allocation2 + $0x328] sm:$0xff]
    %v191 = vld [vmem:[#allocation2 + $0x330] sm:$0xff]
    %v192 = vld [vmem:[#allocation2 + $0x338] sm:$0xff]
    %v193 = vld [vmem:[#allocation2 + $0x340] sm:$0xff]
    %v194 = vld [vmem:[#allocation2 + $0x348] sm:$0xff]
    %v195 = vld [vmem:[#allocation2 + $0x350] sm:$0xff]
    %v196 = vld [vmem:[#allocation2 + $0x358] sm:$0xff]
    %v197 = vld [vmem:[#allocation2 + $0x360] sm:$0xff]
    %v198 = vld [vmem:[#allocation2 + $0x368] sm:$0xff]
    %v199 = vld [vmem:[#allocation2 + $0x370] sm:$0x11]
    %v200 = vld [vmem:[#allocation2 + $0x378] sm:$0x11]
    %v201 = vunpack.c.l.bf16 %v89
    %v202 = vunpack.c.h.bf16 %v89
    %v203 = vunpack.c.l.bf16 %v90
    %v204 = vunpack.c.h.bf16 %v90
    %v205 = vunpack.c.l.bf16 %v91
    %v206 = vunpack.c.h.bf16 %v91
    %v207 = vunpack.c.l.bf16 %v92
    %v208 = vunpack.c.h.bf16 %v92
    %v209 = vunpack.c.l.bf16 %v93
    %v210 = vunpack.c.h.bf16 %v93
    %v211 = vunpack.c.l.bf16 %v94
    %v212 = vunpack.c.h.bf16 %v94
    %v213 = vunpack.c.l.bf16 %v95
    %v214 = vunpack.c.h.bf16 %v95
    %v215 = vunpack.c.l.bf16 %v96
    %v216 = vunpack.c.h.bf16 %v96
    %v217 = vunpack.c.l.bf16 %v97
    %v218 = vunpack.c.h.bf16 %v97
    %v219 = vunpack.c.l.bf16 %v98
    %v220 = vunpack.c.h.bf16 %v98
    %v221 = vunpack.c.l.bf16 %v99
    %v222 = vunpack.c.h.bf16 %v99
    %v223 = vunpack.c.l.bf16 %v100
    %v224 = vunpack.c.h.bf16 %v100
    %v225 = vunpack.c.l.bf16 %v101
    %v226 = vunpack.c.h.bf16 %v101
    %v227 = vunpack.c.l.bf16 %v102
    %v228 = vunpack.c.h.bf16 %v102
    %v229 = vunpack.c.l.bf16 %v103
    %v230 = vunpack.c.h.bf16 %v103
    %v231 = vunpack.c.l.bf16 %v104
    %v232 = vunpack.c.h.bf16 %v104
    %v233 = vunpack.c.l.bf16 %v105
    %v234 = vunpack.c.h.bf16 %v105
    %v235 = vunpack.c.l.bf16 %v106
    %v236 = vunpack.c.h.bf16 %v106
    %v237 = vunpack.c.l.bf16 %v107
    %v238 = vunpack.c.h.bf16 %v107
    %v239 = vunpack.c.l.bf16 %v108
    %v240 = vunpack.c.h.bf16 %v108
    %v241 = vunpack.c.l.bf16 %v109
    %v242 = vunpack.c.h.bf16 %v109
    %v243 = vunpack.c.l.bf16 %v110
    %v244 = vunpack.c.h.bf16 %v110
    %v245 = vunpack.c.l.bf16 %v111
    %v246 = vunpack.c.h.bf16 %v111
    %v247 = vunpack.c.l.bf16 %v112
    %v248 = vunpack.c.h.bf16 %v112
    %v249 = vunpack.c.l.bf16 %v113
    %v250 = vunpack.c.h.bf16 %v113
    %v251 = vunpack.c.l.bf16 %v114
    %v252 = vunpack.c.h.bf16 %v114
    %v253 = vunpack.c.l.bf16 %v115
    %v254 = vunpack.c.h.bf16 %v115
    %v255 = vunpack.c.l.bf16 %v116
    %v256 = vunpack.c.h.bf16 %v116
    %v257 = vunpack.c.l.bf16 %v117
    %v258 = vunpack.c.h.bf16 %v117
    %v259 = vunpack.c.l.bf16 %v118
    %v260 = vunpack.c.h.bf16 %v118
    %v261 = vunpack.c.l.bf16 %v119
    %v262 = vunpack.c.h.bf16 %v119
    %v263 = vunpack.c.l.bf16 %v120
    %v264 = vunpack.c.h.bf16 %v120
    %v265 = vunpack.c.l.bf16 %v121
    %v266 = vunpack.c.h.bf16 %v121
    %v267 = vunpack.c.l.bf16 %v122
    %v268 = vunpack.c.h.bf16 %v122
    %v269 = vunpack.c.l.bf16 %v123
    %v270 = vunpack.c.h.bf16 %v123
    %v271 = vunpack.c.l.bf16 %v124
    %v272 = vunpack.c.h.bf16 %v124
    %v273 = vunpack.c.l.bf16 %v125
    %v274 = vunpack.c.h.bf16 %v125
    %v275 = vunpack.c.l.bf16 %v126
    %v276 = vunpack.c.h.bf16 %v126
    %v277 = vunpack.c.l.bf16 %v127
    %v278 = vunpack.c.h.bf16 %v127
    %v279 = vunpack.c.l.bf16 %v128
    %v280 = vunpack.c.h.bf16 %v128
    %v281 = vunpack.c.l.bf16 %v129
    %v282 = vunpack.c.h.bf16 %v129
    %v283 = vunpack.c.l.bf16 %v130
    %v284 = vunpack.c.h.bf16 %v130
    %v285 = vunpack.c.l.bf16 %v131
    %v286 = vunpack.c.h.bf16 %v131
    %v287 = vunpack.c.l.bf16 %v132
    %v288 = vunpack.c.h.bf16 %v132
    %v289 = vunpack.c.l.bf16 %v133
    %v290 = vunpack.c.h.bf16 %v133
    %v291 = vunpack.c.l.bf16 %v134
    %v292 = vunpack.c.h.bf16 %v134
    %v293 = vunpack.c.l.bf16 %v135
    %v294 = vunpack.c.h.bf16 %v135
    %v295 = vunpack.c.l.bf16 %v136
    %v296 = vunpack.c.h.bf16 %v136
    %v297 = vunpack.c.l.bf16 %v137
    %v298 = vunpack.c.h.bf16 %v137
    %v299 = vunpack.c.l.bf16 %v138
    %v300 = vunpack.c.h.bf16 %v138
    %v301 = vunpack.c.l.bf16 %v139
    %v302 = vunpack.c.h.bf16 %v139
    %v303 = vunpack.c.l.bf16 %v140
    %v304 = vunpack.c.h.bf16 %v140
    %v305 = vunpack.c.l.bf16 %v141
    %v306 = vunpack.c.h.bf16 %v141
    %v307 = vunpack.c.l.bf16 %v142
    %v308 = vunpack.c.h.bf16 %v142
    %v309 = vunpack.c.l.bf16 %v143
    %v310 = vunpack.c.h.bf16 %v143
    %v311 = vunpack.c.l.bf16 %v144
    %v312 = vunpack.c.h.bf16 %v144
    %v313 = vunpack.c.l.bf16 %v145
    %v314 = vunpack.c.h.bf16 %v145
    %v315 = vunpack.c.l.bf16 %v146
    %v316 = vunpack.c.h.bf16 %v146
    %v317 = vunpack.c.l.bf16 %v147
    %v318 = vunpack.c.h.bf16 %v147
    %v319 = vunpack.c.l.bf16 %v148
    %v320 = vunpack.c.h.bf16 %v148
    %v321 = vunpack.c.l.bf16 %v149
    %v322 = vunpack.c.h.bf16 %v149
    %v323 = vunpack.c.l.bf16 %v150
    %v324 = vunpack.c.h.bf16 %v150
    %v325 = vunpack.c.l.bf16 %v151
    %v326 = vunpack.c.h.bf16 %v151
    %v327 = vunpack.c.l.bf16 %v152
    %v328 = vunpack.c.h.bf16 %v152
    %v329 = vunpack.c.l.bf16 %v153
    %v330 = vunpack.c.h.bf16 %v153
    %v331 = vunpack.c.l.bf16 %v154
    %v332 = vunpack.c.h.bf16 %v154
    %v333 = vunpack.c.l.bf16 %v155
    %v334 = vunpack.c.h.bf16 %v155
    %v335 = vunpack.c.l.bf16 %v156
    %v336 = vunpack.c.h.bf16 %v156
    %v337 = vunpack.c.l.bf16 %v157
    %v338 = vunpack.c.h.bf16 %v157
    %v339 = vunpack.c.l.bf16 %v158
    %v340 = vunpack.c.h.bf16 %v158
    %v341 = vunpack.c.l.bf16 %v159
    %v342 = vunpack.c.h.bf16 %v159
    %v343 = vunpack.c.l.bf16 %v160
    %v344 = vunpack.c.h.bf16 %v160
    %v345 = vunpack.c.l.bf16 %v161
    %v346 = vunpack.c.h.bf16 %v161
    %v347 = vunpack.c.l.bf16 %v162
    %v348 = vunpack.c.h.bf16 %v162
    %v349 = vunpack.c.l.bf16 %v163
    %v350 = vunpack.c.h.bf16 %v163
    %v351 = vunpack.c.l.bf16 %v164
    %v352 = vunpack.c.h.bf16 %v164
    %v353 = vunpack.c.l.bf16 %v165
    %v354 = vunpack.c.h.bf16 %v165
    %v355 = vunpack.c.l.bf16 %v166
    %v356 = vunpack.c.h.bf16 %v166
    %v357 = vunpack.c.l.bf16 %v167
    %v358 = vunpack.c.h.bf16 %v167
    %v359 = vunpack.c.l.bf16 %v168
    %v360 = vunpack.c.h.bf16 %v168
    %v361 = vunpack.c.l.bf16 %v169
    %v362 = vunpack.c.h.bf16 %v169
    %v363 = vunpack.c.l.bf16 %v170
    %v364 = vunpack.c.h.bf16 %v170
    %v365 = vunpack.c.l.bf16 %v171
    %v366 = vunpack.c.h.bf16 %v171
    %v367 = vunpack.c.l.bf16 %v172
    %v368 = vunpack.c.h.bf16 %v172
    %v369 = vunpack.c.l.bf16 %v173
    %v370 = vunpack.c.h.bf16 %v173
    %v371 = vunpack.c.l.bf16 %v174
    %v372 = vunpack.c.h.bf16 %v174
    %v373 = vunpack.c.l.bf16 %v175
    %v374 = vunpack.c.h.bf16 %v175
    %v375 = vunpack.c.l.bf16 %v176
    %v376 = vunpack.c.h.bf16 %v176
    %v377 = vunpack.c.l.bf16 %v177
    %v378 = vunpack.c.h.bf16 %v177
    %v379 = vunpack.c.l.bf16 %v178
    %v380 = vunpack.c.h.bf16 %v178
    %v381 = vunpack.c.l.bf16 %v179
    %v382 = vunpack.c.h.bf16 %v179
    %v383 = vunpack.c.l.bf16 %v180
    %v384 = vunpack.c.h.bf16 %v180
    %v385 = vunpack.c.l.bf16 %v181
    %v386 = vunpack.c.h.bf16 %v181
    %v387 = vunpack.c.l.bf16 %v182
    %v388 = vunpack.c.h.bf16 %v182
    %v389 = vunpack.c.l.bf16 %v183
    %v390 = vunpack.c.h.bf16 %v183
    %v391 = vunpack.c.l.bf16 %v184
    %v392 = vunpack.c.h.bf16 %v184
    %v393 = vunpack.c.l.bf16 %v185
    %v394 = vunpack.c.h.bf16 %v185
    %v395 = vunpack.c.l.bf16 %v186
    %v396 = vunpack.c.h.bf16 %v186
    %v397 = vunpack.c.l.bf16 %v187
    %v398 = vunpack.c.h.bf16 %v187
    %v399 = vunpack.c.l.bf16 %v188
    %v400 = vunpack.c.h.bf16 %v188
    %v401 = vunpack.c.l.bf16 %v189
    %v402 = vunpack.c.h.bf16 %v189
    %v403 = vunpack.c.l.bf16 %v190
    %v404 = vunpack.c.h.bf16 %v190
    %v405 = vunpack.c.l.bf16 %v191
    %v406 = vunpack.c.h.bf16 %v191
    %v407 = vunpack.c.l.bf16 %v192
    %v408 = vunpack.c.h.bf16 %v192
    %v409 = vunpack.c.l.bf16 %v193
    %v410 = vunpack.c.h.bf16 %v193
    %v411 = vunpack.c.l.bf16 %v194
    %v412 = vunpack.c.h.bf16 %v194
    %v413 = vunpack.c.l.bf16 %v195
    %v414 = vunpack.c.h.bf16 %v195
    %v415 = vunpack.c.l.bf16 %v196
    %v416 = vunpack.c.h.bf16 %v196
    %v417 = vunpack.c.l.bf16 %v197
    %v418 = vunpack.c.h.bf16 %v197
    %v419 = vunpack.c.l.bf16 %v198
    %v420 = vunpack.c.h.bf16 %v198
    %v421 = vunpack.c.l.bf16 %v199
    %v422 = vunpack.c.h.bf16 %v199
    %v423 = vunpack.c.l.bf16 %v200
    %v424 = vunpack.c.h.bf16 %v200
    %v425 = vadd.f32 %v201, %v205
    %v426 = vadd.f32 %v425, %v209
    %v427 = vadd.f32 %v426, %v213
    %v428 = vadd.f32 %v427, %v217
    %v429 = vadd.f32 %v428, %v221
    %vm430 = vcmask 1040384
    %v431 = vsel %vm430, %v225, 0.0
    %v432 = vadd.f32 %v429, %v431
    %v433 = vrot.slane %v432, 4
    %v434 = vadd.f32 %v432, %v433
    %v435 = vrot.slane %v434, 2
    %v436 = vadd.f32 %v434, %v435
    %v437 = vrot.slane %v436, 1
    %v438 = vadd.f32 %v436, %v437
    %v439 = vadd.f32 %v202, %v206
    %v440 = vadd.f32 %v439, %v210
    %v441 = vadd.f32 %v440, %v214
    %v442 = vadd.f32 %v441, %v218
    %v443 = vadd.f32 %v442, %v222
    %v444 = vsel %vm430, %v226, 0.0
    %v445 = vadd.f32 %v443, %v444
    %v446 = vrot.slane %v445, 4
    %v447 = vadd.f32 %v445, %v446
    %v448 = vrot.slane %v447, 2
    %v449 = vadd.f32 %v447, %v448
    %v450 = vrot.slane %v449, 1
    %v451 = vadd.f32 %v449, %v450
    %v452 = vadd.f32 %v203, %v207
    %v453 = vadd.f32 %v452, %v211
    %v454 = vadd.f32 %v453, %v215
    %v455 = vadd.f32 %v454, %v219
    %v456 = vadd.f32 %v455, %v223
    %v457 = vsel %vm430, %v227, 0.0
    %v458 = vadd.f32 %v456, %v457
    %v459 = vrot.slane %v458, 4
    %v460 = vadd.f32 %v458, %v459
    %v461 = vrot.slane %v460, 2
    %v462 = vadd.f32 %v460, %v461
    %v463 = vrot.slane %v462, 1
    %v464 = vadd.f32 %v462, %v463
    %v465 = vadd.f32 %v204, %v208
    %v466 = vadd.f32 %v465, %v212
    %v467 = vadd.f32 %v466, %v216
    %v468 = vadd.f32 %v467, %v220
    %v469 = vadd.f32 %v468, %v224
    %v470 = vsel %vm430, %v228, 0.0
    %v471 = vadd.f32 %v469, %v470
    %v472 = vrot.slane %v471, 4
    %v473 = vadd.f32 %v471, %v472
    %v474 = vrot.slane %v473, 2
    %v475 = vadd.f32 %v473, %v474
    %v476 = vrot.slane %v475, 1
    %v477 = vadd.f32 %v475, %v476
    %v478 = vadd.f32 %v229, %v233
    %v479 = vadd.f32 %v478, %v237
    %v480 = vadd.f32 %v479, %v241
    %v481 = vadd.f32 %v480, %v245
    %v482 = vadd.f32 %v481, %v249
    %v483 = vsel %vm430, %v253, 0.0
    %v484 = vadd.f32 %v482, %v483
    %v485 = vrot.slane %v484, 4
    %v486 = vadd.f32 %v484, %v485
    %v487 = vrot.slane %v486, 2
    %v488 = vadd.f32 %v486, %v487
    %v489 = vrot.slane %v488, 1
    %v490 = vadd.f32 %v488, %v489
    %v491 = vadd.f32 %v230, %v234
    %v492 = vadd.f32 %v491, %v238
    %v493 = vadd.f32 %v492, %v242
    %v494 = vadd.f32 %v493, %v246
    %v495 = vadd.f32 %v494, %v250
    %v496 = vsel %vm430, %v254, 0.0
    %v497 = vadd.f32 %v495, %v496
    %v498 = vrot.slane %v497, 4
    %v499 = vadd.f32 %v497, %v498
    %v500 = vrot.slane %v499, 2
    %v501 = vadd.f32 %v499, %v500
    %v502 = vrot.slane %v501, 1
    %v503 = vadd.f32 %v501, %v502
    %v504 = vadd.f32 %v231, %v235
    %v505 = vadd.f32 %v504, %v239
    %v506 = vadd.f32 %v505, %v243
    %v507 = vadd.f32 %v506, %v247
    %v508 = vadd.f32 %v507, %v251
    %v509 = vsel %vm430, %v255, 0.0
    %v510 = vadd.f32 %v508, %v509
    %v511 = vrot.slane %v510, 4
    %v512 = vadd.f32 %v510, %v511
    %v513 = vrot.slane %v512, 2
    %v514 = vadd.f32 %v512, %v513
    %v515 = vrot.slane %v514, 1
    %v516 = vadd.f32 %v514, %v515
    %v517 = vadd.f32 %v232, %v236
    %v518 = vadd.f32 %v517, %v240
    %v519 = vadd.f32 %v518, %v244
    %v520 = vadd.f32 %v519, %v248
    %v521 = vadd.f32 %v520, %v252
    %v522 = vsel %vm430, %v256, 0.0
    %v523 = vadd.f32 %v521, %v522
    %v524 = vrot.slane %v523, 4
    %v525 = vadd.f32 %v523, %v524
    %v526 = vrot.slane %v525, 2
    %v527 = vadd.f32 %v525, %v526
    %v528 = vrot.slane %v527, 1
    %v529 = vadd.f32 %v527, %v528
    %v530 = vadd.f32 %v257, %v261
    %v531 = vadd.f32 %v530, %v265
    %v532 = vadd.f32 %v531, %v269
    %v533 = vadd.f32 %v532, %v273
    %v534 = vadd.f32 %v533, %v277
    %v535 = vsel %vm430, %v281, 0.0
    %v536 = vadd.f32 %v534, %v535
    %v537 = vrot.slane %v536, 4
    %v538 = vadd.f32 %v536, %v537
    %v539 = vrot.slane %v538, 2
    %v540 = vadd.f32 %v538, %v539
    %v541 = vrot.slane %v540, 1
    %v542 = vadd.f32 %v540, %v541
    %v543 = vadd.f32 %v258, %v262
    %v544 = vadd.f32 %v543, %v266
    %v545 = vadd.f32 %v544, %v270
    %v546 = vadd.f32 %v545, %v274
    %v547 = vadd.f32 %v546, %v278
    %v548 = vsel %vm430, %v282, 0.0
    %v549 = vadd.f32 %v547, %v548
    %v550 = vrot.slane %v549, 4
    %v551 = vadd.f32 %v549, %v550
    %v552 = vrot.slane %v551, 2
    %v553 = vadd.f32 %v551, %v552
    %v554 = vrot.slane %v553, 1
    %v555 = vadd.f32 %v553, %v554
    %v556 = vadd.f32 %v259, %v263
    %v557 = vadd.f32 %v556, %v267
    %v558 = vadd.f32 %v557, %v271
    %v559 = vadd.f32 %v558, %v275
    %v560 = vadd.f32 %v559, %v279
    %v561 = vsel %vm430, %v283, 0.0
    %v562 = vadd.f32 %v560, %v561
    %v563 = vrot.slane %v562, 4
    %v564 = vadd.f32 %v562, %v563
    %v565 = vrot.slane %v564, 2
    %v566 = vadd.f32 %v564, %v565
    %v567 = vrot.slane %v566, 1
    %v568 = vadd.f32 %v566, %v567
    %v569 = vadd.f32 %v260, %v264
    %v570 = vadd.f32 %v569, %v268
    %v571 = vadd.f32 %v570, %v272
    %v572 = vadd.f32 %v571, %v276
    %v573 = vadd.f32 %v572, %v280
    %v574 = vsel %vm430, %v284, 0.0
    %v575 = vadd.f32 %v573, %v574
    %v576 = vrot.slane %v575, 4
    %v577 = vadd.f32 %v575, %v576
    %v578 = vrot.slane %v577, 2
    %v579 = vadd.f32 %v577, %v578
    %v580 = vrot.slane %v579, 1
    %v581 = vadd.f32 %v579, %v580
    %v582 = vadd.f32 %v285, %v289
    %v583 = vadd.f32 %v582, %v293
    %v584 = vadd.f32 %v583, %v297
    %v585 = vadd.f32 %v584, %v301
    %v586 = vadd.f32 %v585, %v305
    %v587 = vsel %vm430, %v309, 0.0
    %v588 = vadd.f32 %v586, %v587
    %v589 = vrot.slane %v588, 4
    %v590 = vadd.f32 %v588, %v589
    %v591 = vrot.slane %v590, 2
    %v592 = vadd.f32 %v590, %v591
    %v593 = vrot.slane %v592, 1
    %v594 = vadd.f32 %v592, %v593
    %v595 = vadd.f32 %v286, %v290
    %v596 = vadd.f32 %v595, %v294
    %v597 = vadd.f32 %v596, %v298
    %v598 = vadd.f32 %v597, %v302
    %v599 = vadd.f32 %v598, %v306
    %v600 = vsel %vm430, %v310, 0.0
    %v601 = vadd.f32 %v599, %v600
    %v602 = vrot.slane %v601, 4
    %v603 = vadd.f32 %v601, %v602
    %v604 = vrot.slane %v603, 2
    %v605 = vadd.f32 %v603, %v604
    %v606 = vrot.slane %v605, 1
    %v607 = vadd.f32 %v605, %v606
    %v608 = vadd.f32 %v287, %v291
    %v609 = vadd.f32 %v608, %v295
    %v610 = vadd.f32 %v609, %v299
    %v611 = vadd.f32 %v610, %v303
    %v612 = vadd.f32 %v611, %v307
    %v613 = vsel %vm430, %v311, 0.0
    %v614 = vadd.f32 %v612, %v613
    %v615 = vrot.slane %v614, 4
    %v616 = vadd.f32 %v614, %v615
    %v617 = vrot.slane %v616, 2
    %v618 = vadd.f32 %v616, %v617
    %v619 = vrot.slane %v618, 1
    %v620 = vadd.f32 %v618, %v619
    %v621 = vadd.f32 %v288, %v292
    %v622 = vadd.f32 %v621, %v296
    %v623 = vadd.f32 %v622, %v300
    %v624 = vadd.f32 %v623, %v304
    %v625 = vadd.f32 %v624, %v308
    %v626 = vsel %vm430, %v312, 0.0
    %v627 = vadd.f32 %v625, %v626
    %v628 = vrot.slane %v627, 4
    %v629 = vadd.f32 %v627, %v628
    %v630 = vrot.slane %v629, 2
    %v631 = vadd.f32 %v629, %v630
    %v632 = vrot.slane %v631, 1
    %v633 = vadd.f32 %v631, %v632
    %v634 = vadd.f32 %v313, %v317
    %v635 = vadd.f32 %v634, %v321
    %v636 = vadd.f32 %v635, %v325
    %v637 = vadd.f32 %v636, %v329
    %v638 = vadd.f32 %v637, %v333
    %v639 = vsel %vm430, %v337, 0.0
    %v640 = vadd.f32 %v638, %v639
    %v641 = vrot.slane %v640, 4
    %v642 = vadd.f32 %v640, %v641
    %v643 = vrot.slane %v642, 2
    %v644 = vadd.f32 %v642, %v643
    %v645 = vrot.slane %v644, 1
    %v646 = vadd.f32 %v644, %v645
    %v647 = vadd.f32 %v314, %v318
    %v648 = vadd.f32 %v647, %v322
    %v649 = vadd.f32 %v648, %v326
    %v650 = vadd.f32 %v649, %v330
    %v651 = vadd.f32 %v650, %v334
    %v652 = vsel %vm430, %v338, 0.0
    %v653 = vadd.f32 %v651, %v652
    %v654 = vrot.slane %v653, 4
    %v655 = vadd.f32 %v653, %v654
    %v656 = vrot.slane %v655, 2
    %v657 = vadd.f32 %v655, %v656
    %v658 = vrot.slane %v657, 1
    %v659 = vadd.f32 %v657, %v658
    %v660 = vadd.f32 %v315, %v319
    %v661 = vadd.f32 %v660, %v323
    %v662 = vadd.f32 %v661, %v327
    %v663 = vadd.f32 %v662, %v331
    %v664 = vadd.f32 %v663, %v335
    %v665 = vsel %vm430, %v339, 0.0
    %v666 = vadd.f32 %v664, %v665
    %v667 = vrot.slane %v666, 4
    %v668 = vadd.f32 %v666, %v667
    %v669 = vrot.slane %v668, 2
    %v670 = vadd.f32 %v668, %v669
    %v671 = vrot.slane %v670, 1
    %v672 = vadd.f32 %v670, %v671
    %v673 = vadd.f32 %v316, %v320
    %v674 = vadd.f32 %v673, %v324
    %v675 = vadd.f32 %v674, %v328
    %v676 = vadd.f32 %v675, %v332
    %v677 = vadd.f32 %v676, %v336
    %v678 = vsel %vm430, %v340, 0.0
    %v679 = vadd.f32 %v677, %v678
    %v680 = vrot.slane %v679, 4
    %v681 = vadd.f32 %v679, %v680
    %v682 = vrot.slane %v681, 2
    %v683 = vadd.f32 %v681, %v682
    %v684 = vrot.slane %v683, 1
    %v685 = vadd.f32 %v683, %v684
    %v686 = vadd.f32 %v341, %v345
    %v687 = vadd.f32 %v686, %v349
    %v688 = vadd.f32 %v687, %v353
    %v689 = vadd.f32 %v688, %v357
    %v690 = vadd.f32 %v689, %v361
    %v691 = vsel %vm430, %v365, 0.0
    %v692 = vadd.f32 %v690, %v691
    %v693 = vrot.slane %v692, 4
    %v694 = vadd.f32 %v692, %v693
    %v695 = vrot.slane %v694, 2
    %v696 = vadd.f32 %v694, %v695
    %v697 = vrot.slane %v696, 1
    %v698 = vadd.f32 %v696, %v697
    %v699 = vadd.f32 %v342, %v346
    %v700 = vadd.f32 %v699, %v350
    %v701 = vadd.f32 %v700, %v354
    %v702 = vadd.f32 %v701, %v358
    %v703 = vadd.f32 %v702, %v362
    %v704 = vsel %vm430, %v366, 0.0
    %v705 = vadd.f32 %v703, %v704
    %v706 = vrot.slane %v705, 4
    %v707 = vadd.f32 %v705, %v706
    %v708 = vrot.slane %v707, 2
    %v709 = vadd.f32 %v707, %v708
    %v710 = vrot.slane %v709, 1
    %v711 = vadd.f32 %v709, %v710
    %v712 = vadd.f32 %v343, %v347
    %v713 = vadd.f32 %v712, %v351
    %v714 = vadd.f32 %v713, %v355
    %v715 = vadd.f32 %v714, %v359
    %v716 = vadd.f32 %v715, %v363
    %v717 = vsel %vm430, %v367, 0.0
    %v718 = vadd.f32 %v716, %v717
    %v719 = vrot.slane %v718, 4
    %v720 = vadd.f32 %v718, %v719
    %v721 = vrot.slane %v720, 2
    %v722 = vadd.f32 %v720, %v721
    %v723 = vrot.slane %v722, 1
    %v724 = vadd.f32 %v722, %v723
    %v725 = vadd.f32 %v344, %v348
    %v726 = vadd.f32 %v725, %v352
    %v727 = vadd.f32 %v726, %v356
    %v728 = vadd.f32 %v727, %v360
    %v729 = vadd.f32 %v728, %v364
    %v730 = vsel %vm430, %v368, 0.0
    %v731 = vadd.f32 %v729, %v730
    %v732 = vrot.slane %v731, 4
    %v733 = vadd.f32 %v731, %v732
    %v734 = vrot.slane %v733, 2
    %v735 = vadd.f32 %v733, %v734
    %v736 = vrot.slane %v735, 1
    %v737 = vadd.f32 %v735, %v736
    %v738 = vadd.f32 %v369, %v373
    %v739 = vadd.f32 %v738, %v377
    %v740 = vadd.f32 %v739, %v381
    %v741 = vadd.f32 %v740, %v385
    %v742 = vadd.f32 %v741, %v389
    %v743 = vsel %vm430, %v393, 0.0
    %v744 = vadd.f32 %v742, %v743
    %v745 = vrot.slane %v744, 4
    %v746 = vadd.f32 %v744, %v745
    %v747 = vrot.slane %v746, 2
    %v748 = vadd.f32 %v746, %v747
    %v749 = vrot.slane %v748, 1
    %v750 = vadd.f32 %v748, %v749
    %v751 = vadd.f32 %v370, %v374
    %v752 = vadd.f32 %v751, %v378
    %v753 = vadd.f32 %v752, %v382
    %v754 = vadd.f32 %v753, %v386
    %v755 = vadd.f32 %v754, %v390
    %v756 = vsel %vm430, %v394, 0.0
    %v757 = vadd.f32 %v755, %v756
    %v758 = vrot.slane %v757, 4
    %v759 = vadd.f32 %v757, %v758
    %v760 = vrot.slane %v759, 2
    %v761 = vadd.f32 %v759, %v760
    %v762 = vrot.slane %v761, 1
    %v763 = vadd.f32 %v761, %v762
    %v764 = vadd.f32 %v371, %v375
    %v765 = vadd.f32 %v764, %v379
    %v766 = vadd.f32 %v765, %v383
    %v767 = vadd.f32 %v766, %v387
    %v768 = vadd.f32 %v767, %v391
    %v769 = vsel %vm430, %v395, 0.0
    %v770 = vadd.f32 %v768, %v769
    %v771 = vrot.slane %v770, 4
    %v772 = vadd.f32 %v770, %v771
    %v773 = vrot.slane %v772, 2
    %v774 = vadd.f32 %v772, %v773
    %v775 = vrot.slane %v774, 1
    %v776 = vadd.f32 %v774, %v775
    %v777 = vadd.f32 %v372, %v376
    %v778 = vadd.f32 %v777, %v380
    %v779 = vadd.f32 %v778, %v384
    %v780 = vadd.f32 %v779, %v388
    %v781 = vadd.f32 %v780, %v392
    %v782 = vsel %vm430, %v396, 0.0
    %v783 = vadd.f32 %v781, %v782
    %v784 = vrot.slane %v783, 4
    %v785 = vadd.f32 %v783, %v784
    %v786 = vrot.slane %v785, 2
    %v787 = vadd.f32 %v785, %v786
    %v788 = vrot.slane %v787, 1
    %v789 = vadd.f32 %v787, %v788
    %v790 = vadd.f32 %v397, %v401
    %v791 = vadd.f32 %v790, %v405
    %v792 = vadd.f32 %v791, %v409
    %v793 = vadd.f32 %v792, %v413
    %v794 = vadd.f32 %v793, %v417
    %v795 = vsel %vm430, %v421, 0.0
    %v796 = vadd.f32 %v794, %v795
    %v797 = vrot.slane %v796, 4
    %v798 = vadd.f32 %v796, %v797
    %v799 = vrot.slane %v798, 2
    %v800 = vadd.f32 %v798, %v799
    %v801 = vrot.slane %v800, 1
    %v802 = vadd.f32 %v800, %v801
    %v803 = vadd.f32 %v398, %v402
    %v804 = vadd.f32 %v803, %v406
    %v805 = vadd.f32 %v804, %v410
    %v806 = vadd.f32 %v805, %v414
    %v807 = vadd.f32 %v806, %v418
    %v808 = vsel %vm430, %v422, 0.0
    %v809 = vadd.f32 %v807, %v808
    %v810 = vrot.slane %v809, 4
    %v811 = vadd.f32 %v809, %v810
    %v812 = vrot.slane %v811, 2
    %v813 = vadd.f32 %v811, %v812
    %v814 = vrot.slane %v813, 1
    %v815 = vadd.f32 %v813, %v814
    %v816 = vadd.f32 %v399, %v403
    %v817 = vadd.f32 %v816, %v407
    %v818 = vadd.f32 %v817, %v411
    %v819 = vadd.f32 %v818, %v415
    %v820 = vadd.f32 %v819, %v419
    %v821 = vsel %vm430, %v423, 0.0
    %v822 = vadd.f32 %v820, %v821
    %v823 = vrot.slane %v822, 4
    %v824 = vadd.f32 %v822, %v823
    %v825 = vrot.slane %v824, 2
    %v826 = vadd.f32 %v824, %v825
    %v827 = vrot.slane %v826, 1
    %v828 = vadd.f32 %v826, %v827
    %v829 = vadd.f32 %v400, %v404
    %v830 = vadd.f32 %v829, %v408
    %v831 = vadd.f32 %v830, %v412
    %v832 = vadd.f32 %v831, %v416
    %v833 = vadd.f32 %v832, %v420
    %v834 = vsel %vm430, %v424, 0.0
    %v835 = vadd.f32 %v833, %v834
    %v836 = vrot.slane %v835, 4
    %v837 = vadd.f32 %v835, %v836
    %v838 = vrot.slane %v837, 2
    %v839 = vadd.f32 %v837, %v838
    %v840 = vrot.slane %v839, 1
    %v841 = vadd.f32 %v839, %v840
    %v842 = vrcp.pop 49.0
    %v843 = vmul.f32 %v438, %v842
    %v844 = vmul.f32 %v451, %v842
    %v845 = vmul.f32 %v464, %v842
    %v846 = vmul.f32 %v477, %v842
    %v847 = vmul.f32 %v490, %v842
    %v848 = vmul.f32 %v503, %v842
    %v849 = vmul.f32 %v516, %v842
    %v850 = vmul.f32 %v529, %v842
    %v851 = vmul.f32 %v542, %v842
    %v852 = vmul.f32 %v555, %v842
    %v853 = vmul.f32 %v568, %v842
    %v854 = vmul.f32 %v581, %v842
    %v855 = vmul.f32 %v594, %v842
    %v856 = vmul.f32 %v607, %v842
    %v857 = vmul.f32 %v620, %v842
    %v858 = vmul.f32 %v633, %v842
    %v859 = vmul.f32 %v646, %v842
    %v860 = vmul.f32 %v659, %v842
    %v861 = vmul.f32 %v672, %v842
    %v862 = vmul.f32 %v685, %v842
    %v863 = vmul.f32 %v698, %v842
    %v864 = vmul.f32 %v711, %v842
    %v865 = vmul.f32 %v724, %v842
    %v866 = vmul.f32 %v737, %v842
    %v867 = vmul.f32 %v750, %v842
    %v868 = vmul.f32 %v763, %v842
    %v869 = vmul.f32 %v776, %v842
    %v870 = vmul.f32 %v789, %v842
    %v871 = vmul.f32 %v802, %v842
    %v872 = vmul.f32 %v815, %v842
    %v873 = vmul.f32 %v828, %v842
    %v874 = vmul.f32 %v841, %v842
    %v875 = vpack.c.bf16 %v843, %v843
    %v876 = vpack.c.bf16 %v844, %v844
    %v877 = vpack.c.bf16 %v845, %v845
    %v878 = vpack.c.bf16 %v846, %v846
    %v879 = vpack.c.bf16 %v847, %v847
    %v880 = vpack.c.bf16 %v848, %v848
    %v881 = vpack.c.bf16 %v849, %v849
    %v882 = vpack.c.bf16 %v850, %v850
    %v883 = vpack.c.bf16 %v851, %v851
    %v884 = vpack.c.bf16 %v852, %v852
    %v885 = vpack.c.bf16 %v853, %v853
    %v886 = vpack.c.bf16 %v854, %v854
    %v887 = vpack.c.bf16 %v855, %v855
    %v888 = vpack.c.bf16 %v856, %v856
    %v889 = vpack.c.bf16 %v857, %v857
    %v890 = vpack.c.bf16 %v858, %v858
    %v891 = vpack.c.bf16 %v859, %v859
    %v892 = vpack.c.bf16 %v860, %v860
    %v893 = vpack.c.bf16 %v861, %v861
    %v894 = vpack.c.bf16 %v862, %v862
    %v895 = vpack.c.bf16 %v863, %v863
    %v896 = vpack.c.bf16 %v864, %v864
    %v897 = vpack.c.bf16 %v865, %v865
    %v898 = vpack.c.bf16 %v866, %v866
    %v899 = vpack.c.bf16 %v867, %v867
    %v900 = vpack.c.bf16 %v868, %v868
    %v901 = vpack.c.bf16 %v869, %v869
    %v902 = vpack.c.bf16 %v870, %v870
    %v903 = vpack.c.bf16 %v871, %v871
    %v904 = vpack.c.bf16 %v872, %v872
    %v905 = vpack.c.bf16 %v873, %v873
    %v906 = vpack.c.bf16 %v874, %v874
    %v907 = vld [vmem:[#allocation5] sm:$0xff]
    %v908 = vld [vmem:[#allocation5 + $0x8] sm:$0xff]
    %v909 = vld [vmem:[#allocation5 + $0x10] sm:$0xff]
    %v910 = vld [vmem:[#allocation5 + $0x18] sm:$0xff]
    %v911 = vld [vmem:[#allocation5 + $0x20] sm:$0xff]
    %v912 = vld [vmem:[#allocation5 + $0x28] sm:$0xff]
    %v913 = vld [vmem:[#allocation5 + $0x30] sm:$0xff]
    %v914 = vld [vmem:[#allocation5 + $0x38] sm:$0xff]
    %v915 = vld [vmem:[#allocation5 + $0x40] sm:$0xff]
    %v916 = vld [vmem:[#allocation5 + $0x48] sm:$0xff]
    %v917 = vld [vmem:[#allocation5 + $0x50] sm:$0xff]
    %v918 = vld [vmem:[#allocation5 + $0x58] sm:$0xff]
    %v919 = vld [vmem:[#allocation5 + $0x60] sm:$0xff]
    %v920 = vld [vmem:[#allocation5 + $0x68] sm:$0xff]
    %v921 = vld [vmem:[#allocation5 + $0x70] sm:$0xff]
    %v922 = vld [vmem:[#allocation5 + $0x78] sm:$0xff]
    %v923 = vld [vmem:[#allocation5 + $0x80] sm:$0xff]
    %v924 = vld [vmem:[#allocation5 + $0x88] sm:$0xff]
    %v925 = vld [vmem:[#allocation5 + $0x90] sm:$0xff]
    %v926 = vld [vmem:[#allocation5 + $0x98] sm:$0xff]
    %v927 = vld [vmem:[#allocation5 + $0xa0] sm:$0xff]
    %v928 = vld [vmem:[#allocation5 + $0xa8] sm:$0xff]
    %v929 = vld [vmem:[#allocation5 + $0xb0] sm:$0xff]
    %v930 = vld [vmem:[#allocation5 + $0xb8] sm:$0xff]
    %v931 = vld [vmem:[#allocation5 + $0xc0] sm:$0xff]
    %v932 = vld [vmem:[#allocation5 + $0xc8] sm:$0xff]
    %v933 = vld [vmem:[#allocation5 + $0xd0] sm:$0xff]
    %v934 = vld [vmem:[#allocation5 + $0xd8] sm:$0xff]
    %v935 = vld [vmem:[#allocation5 + $0xe0] sm:$0xff]
    %v936 = vld [vmem:[#allocation5 + $0xe8] sm:$0xff]
    %v937 = vld [vmem:[#allocation5 + $0xf0] sm:$0xff]
    %v938 = vld [vmem:[#allocation5 + $0xf8] sm:$0xff]
    %v939 = vld [vmem:[#allocation5 + $0x100] sm:$0xff]
    %v940 = vld [vmem:[#allocation5 + $0x108] sm:$0xff]
    %v941 = vld [vmem:[#allocation5 + $0x110] sm:$0xff]
    %v942 = vld [vmem:[#allocation5 + $0x118] sm:$0xff]
    %v943 = vld [vmem:[#allocation5 + $0x120] sm:$0xff]
    %v944 = vld [vmem:[#allocation5 + $0x128] sm:$0xff]
    %v945 = vld [vmem:[#allocation5 + $0x130] sm:$0xff]
    %v946 = vld [vmem:[#allocation5 + $0x138] sm:$0xff]
    %v947 = vld [vmem:[#allocation5 + $0x140] sm:$0xff]
    %v948 = vld [vmem:[#allocation5 + $0x148] sm:$0xff]
    %v949 = vld [vmem:[#allocation5 + $0x150] sm:$0xff]
    %v950 = vld [vmem:[#allocation5 + $0x158] sm:$0xff]
    %v951 = vld [vmem:[#allocation5 + $0x160] sm:$0xff]
    %v952 = vld [vmem:[#allocation5 + $0x168] sm:$0xff]
    %v953 = vld [vmem:[#allocation5 + $0x170] sm:$0xff]
    %v954 = vld [vmem:[#allocation5 + $0x178] sm:$0xff]
    %v955 = vld [vmem:[#allocation5 + $0x180] sm:$0xff]
    %v956 = vld [vmem:[#allocation5 + $0x188] sm:$0xff]
    %v957 = vld [vmem:[#allocation5 + $0x190] sm:$0xff]
    %v958 = vld [vmem:[#allocation5 + $0x198] sm:$0xff]
    %v959 = vld [vmem:[#allocation5 + $0x1a0] sm:$0xff]
    %v960 = vld [vmem:[#allocation5 + $0x1a8] sm:$0xff]
    %v961 = vld [vmem:[#allocation5 + $0x1b0] sm:$0xff]
    %v962 = vld [vmem:[#allocation5 + $0x1b8] sm:$0xff]
    %v963 = vld [vmem:[#allocation5 + $0x1c0] sm:$0xff]
    %v964 = vld [vmem:[#allocation5 + $0x1c8] sm:$0xff]
    %v965 = vld [vmem:[#allocation5 + $0x1d0] sm:$0xff]
    %v966 = vld [vmem:[#allocation5 + $0x1d8] sm:$0xff]
    %v967 = vld [vmem:[#allocation5 + $0x1e0] sm:$0xff]
    %v968 = vld [vmem:[#allocation5 + $0x1e8] sm:$0xff]
    %v969 = vld [vmem:[#allocation5 + $0x1f0] sm:$0xff]
    %v970 = vld [vmem:[#allocation5 + $0x1f8] sm:$0xff]
    %v971 = vld [vmem:[#allocation7] sm:$0x3]
    %v973 = vlaneseq
    %v974 = vshrl.u32 %v973, 7
    %v975 = vsub.s32 0, %v974
    %v976 = vrot.slane %v971, %v975
    %v977 = vlaneseq
    %v978 = vshrl.u32 %v977, 7
    %v979 = vsub.s32 1, %v978
    %v980 = vrot.slane %v971, %v979
    %v1015 = vunpack.c.l.b16 %v875
    %v1016 = vunpack.c.l.b16 %v876
    %v1017 = vunpack.c.l.b16 %v877
    %v1018 = vunpack.c.l.b16 %v878
    %v1019 = vunpack.c.l.b16 %v879
    %v1020 = vunpack.c.l.b16 %v880
    %v1021 = vunpack.c.l.b16 %v881
    %v1022 = vunpack.c.l.b16 %v882
    %v1023 = vunpack.c.l.b16 %v883
    %v1024 = vunpack.c.l.b16 %v884
    %v1025 = vunpack.c.l.b16 %v885
    %v1026 = vunpack.c.l.b16 %v886
    %v1027 = vunpack.c.l.b16 %v887
    %v1028 = vunpack.c.l.b16 %v888
    %v1029 = vunpack.c.l.b16 %v889
    %v1030 = vunpack.c.l.b16 %v890
    %v1031 = vunpack.c.l.b16 %v891
    %v1032 = vunpack.c.l.b16 %v892
    %v1033 = vunpack.c.l.b16 %v893
    %v1034 = vunpack.c.l.b16 %v894
    %v1035 = vunpack.c.l.b16 %v895
    %v1036 = vunpack.c.l.b16 %v896
    %v1037 = vunpack.c.l.b16 %v897
    %v1038 = vunpack.c.l.b16 %v898
    %v1039 = vunpack.c.l.b16 %v899
    %v1040 = vunpack.c.l.b16 %v900
    %v1041 = vunpack.c.l.b16 %v901
    %v1042 = vunpack.c.l.b16 %v902
    %v1043 = vunpack.c.l.b16 %v903
    %v1044 = vunpack.c.l.b16 %v904
    %v1045 = vunpack.c.l.b16 %v905
    %v1046 = vunpack.c.l.b16 %v906
    %vm1047 = vcmask 1041409
    %v1048 = vsel %vm1047, %v1019, %v1015
    %vm1049 = vcmask 1042434
    %v1050 = vsel %vm1049, %v1023, %v1048
    %vm1051 = vcmask 1043459
    %v1052 = vsel %vm1051, %v1027, %v1050
    %vm1053 = vcmask 1044484
    %v1054 = vsel %vm1053, %v1031, %v1052
    %vm1055 = vcmask 1045509
    %v1056 = vsel %vm1055, %v1035, %v1054
    %vm1057 = vcmask 1046534
    %v1058 = vsel %vm1057, %v1039, %v1056
    %vm1059 = vcmask 1047559
    %v1060 = vsel %vm1059, %v1043, %v1058
    %v1061 = vsel %vm1047, %v1020, %v1016
    %v1062 = vsel %vm1049, %v1024, %v1061
    %v1063 = vsel %vm1051, %v1028, %v1062
    %v1064 = vsel %vm1053, %v1032, %v1063
    %v1065 = vsel %vm1055, %v1036, %v1064
    %v1066 = vsel %vm1057, %v1040, %v1065
    %v1067 = vsel %vm1059, %v1044, %v1066
    %v1068 = vsel %vm1047, %v1021, %v1017
    %v1069 = vsel %vm1049, %v1025, %v1068
    %v1070 = vsel %vm1051, %v1029, %v1069
    %v1071 = vsel %vm1053, %v1033, %v1070
    %v1072 = vsel %vm1055, %v1037, %v1071
    %v1073 = vsel %vm1057, %v1041, %v1072
    %v1074 = vsel %vm1059, %v1045, %v1073
    %v1075 = vsel %vm1047, %v1022, %v1018
    %v1076 = vsel %vm1049, %v1026, %v1075
    %v1077 = vsel %vm1051, %v1030, %v1076
    %v1078 = vsel %vm1053, %v1034, %v1077
    %v1079 = vsel %vm1055, %v1038, %v1078
    %v1080 = vsel %vm1057, %v1042, %v1079
    %v1081 = vsel %vm1059, %v1046, %v1080
    %v1082 = vpack.c.b16 %v1060, %v1060
    %v1083 = vpack.c.b16 %v1067, %v1067
    %v1084 = vpack.c.b16 %v1074, %v1074
    %v1085 = vpack.c.b16 %v1081, %v1081
    %v1154 = vunpack.c.l.b16 %v907
    %v1155 = vunpack.c.h.b16 %v907
    %v1156 = vunpack.c.l.b16 %v908
    %v1157 = vunpack.c.h.b16 %v908
    %v1158 = vunpack.c.l.b16 %v909
    %v1159 = vunpack.c.h.b16 %v909
    %v1160 = vunpack.c.l.b16 %v910
    %v1161 = vunpack.c.h.b16 %v910
    %v1162 = vunpack.c.l.b16 %v911
    %v1163 = vunpack.c.h.b16 %v911
    %v1164 = vunpack.c.l.b16 %v912
    %v1165 = vunpack.c.h.b16 %v912
    %v1166 = vunpack.c.l.b16 %v913
    %v1167 = vunpack.c.h.b16 %v913
    %v1168 = vunpack.c.l.b16 %v914
    %v1169 = vunpack.c.h.b16 %v914
    %v1170 = vunpack.c.l.b16 %v915
    %v1171 = vunpack.c.h.b16 %v915
    %v1172 = vunpack.c.l.b16 %v916
    %v1173 = vunpack.c.h.b16 %v916
    %v1174 = vunpack.c.l.b16 %v917
    %v1175 = vunpack.c.h.b16 %v917
    %v1176 = vunpack.c.l.b16 %v918
    %v1177 = vunpack.c.h.b16 %v918
    %v1178 = vunpack.c.l.b16 %v919
    %v1179 = vunpack.c.h.b16 %v919
    %v1180 = vunpack.c.l.b16 %v920
    %v1181 = vunpack.c.h.b16 %v920
    %v1182 = vunpack.c.l.b16 %v921
    %v1183 = vunpack.c.h.b16 %v921
    %v1184 = vunpack.c.l.b16 %v922
    %v1185 = vunpack.c.h.b16 %v922
    %v1186 = vunpack.c.l.b16 %v923
    %v1187 = vunpack.c.h.b16 %v923
    %v1188 = vunpack.c.l.b16 %v924
    %v1189 = vunpack.c.h.b16 %v924
    %v1190 = vunpack.c.l.b16 %v925
    %v1191 = vunpack.c.h.b16 %v925
    %v1192 = vunpack.c.l.b16 %v926
    %v1193 = vunpack.c.h.b16 %v926
    %v1194 = vunpack.c.l.b16 %v927
    %v1195 = vunpack.c.h.b16 %v927
    %v1196 = vunpack.c.l.b16 %v928
    %v1197 = vunpack.c.h.b16 %v928
    %v1198 = vunpack.c.l.b16 %v929
    %v1199 = vunpack.c.h.b16 %v929
    %v1200 = vunpack.c.l.b16 %v930
    %v1201 = vunpack.c.h.b16 %v930
    %v1202 = vunpack.c.l.b16 %v931
    %v1203 = vunpack.c.h.b16 %v931
    %v1204 = vunpack.c.l.b16 %v932
    %v1205 = vunpack.c.h.b16 %v932
    %v1206 = vunpack.c.l.b16 %v933
    %v1207 = vunpack.c.h.b16 %v933
    %v1208 = vunpack.c.l.b16 %v934
    %v1209 = vunpack.c.h.b16 %v934
    %v1210 = vunpack.c.l.b16 %v935
    %v1211 = vunpack.c.h.b16 %v935
    %v1212 = vunpack.c.l.b16 %v936
    %v1213 = vunpack.c.h.b16 %v936
    %v1214 = vunpack.c.l.b16 %v937
    %v1215 = vunpack.c.h.b16 %v937
    %v1216 = vunpack.c.l.b16 %v938
    %v1217 = vunpack.c.h.b16 %v938
    %v1218 = vunpack.c.l.b16 %v939
    %v1219 = vunpack.c.h.b16 %v939
    %v1220 = vunpack.c.l.b16 %v940
    %v1221 = vunpack.c.h.b16 %v940
    %v1222 = vunpack.c.l.b16 %v941
    %v1223 = vunpack.c.h.b16 %v941
    %v1224 = vunpack.c.l.b16 %v942
    %v1225 = vunpack.c.h.b16 %v942
    %v1226 = vunpack.c.l.b16 %v943
    %v1227 = vunpack.c.h.b16 %v943
    %v1228 = vunpack.c.l.b16 %v944
    %v1229 = vunpack.c.h.b16 %v944
    %v1230 = vunpack.c.l.b16 %v945
    %v1231 = vunpack.c.h.b16 %v945
    %v1232 = vunpack.c.l.b16 %v946
    %v1233 = vunpack.c.h.b16 %v946
    %v1234 = vunpack.c.l.b16 %v947
    %v1235 = vunpack.c.h.b16 %v947
    %v1236 = vunpack.c.l.b16 %v948
    %v1237 = vunpack.c.h.b16 %v948
    %v1238 = vunpack.c.l.b16 %v949
    %v1239 = vunpack.c.h.b16 %v949
    %v1240 = vunpack.c.l.b16 %v950
    %v1241 = vunpack.c.h.b16 %v950
    %v1242 = vunpack.c.l.b16 %v951
    %v1243 = vunpack.c.h.b16 %v951
    %v1244 = vunpack.c.l.b16 %v952
    %v1245 = vunpack.c.h.b16 %v952
    %v1246 = vunpack.c.l.b16 %v953
    %v1247 = vunpack.c.h.b16 %v953
    %v1248 = vunpack.c.l.b16 %v954
    %v1249 = vunpack.c.h.b16 %v954
    %v1250 = vunpack.c.l.b16 %v955
    %v1251 = vunpack.c.h.b16 %v955
    %v1252 = vunpack.c.l.b16 %v956
    %v1253 = vunpack.c.h.b16 %v956
    %v1254 = vunpack.c.l.b16 %v957
    %v1255 = vunpack.c.h.b16 %v957
    %v1256 = vunpack.c.l.b16 %v958
    %v1257 = vunpack.c.h.b16 %v958
    %v1258 = vunpack.c.l.b16 %v959
    %v1259 = vunpack.c.h.b16 %v959
    %v1260 = vunpack.c.l.b16 %v960
    %v1261 = vunpack.c.h.b16 %v960
    %v1262 = vunpack.c.l.b16 %v961
    %v1263 = vunpack.c.h.b16 %v961
    %v1264 = vunpack.c.l.b16 %v962
    %v1265 = vunpack.c.h.b16 %v962
    %v1266 = vunpack.c.l.b16 %v963
    %v1267 = vunpack.c.h.b16 %v963
    %v1268 = vunpack.c.l.b16 %v964
    %v1269 = vunpack.c.h.b16 %v964
    %v1270 = vunpack.c.l.b16 %v965
    %v1271 = vunpack.c.h.b16 %v965
    %v1272 = vunpack.c.l.b16 %v966
    %v1273 = vunpack.c.h.b16 %v966
    %v1274 = vunpack.c.l.b16 %v967
    %v1275 = vunpack.c.h.b16 %v967
    %v1276 = vunpack.c.l.b16 %v968
    %v1277 = vunpack.c.h.b16 %v968
    %v1278 = vunpack.c.l.b16 %v969
    %v1279 = vunpack.c.h.b16 %v969
    %v1280 = vunpack.c.l.b16 %v970
    %v1281 = vunpack.c.h.b16 %v970
    %v1282 = vpack.c.b16 %v1156, %v1154
    %v1283 = vpack.c.b16 %v1157, %v1155
    %v1284 = vpack.c.b16 %v1160, %v1158
    %v1285 = vpack.c.b16 %v1161, %v1159
    %v1286 = vpack.c.b16 %v1164, %v1162
    %v1287 = vpack.c.b16 %v1165, %v1163
    %v1288 = vpack.c.b16 %v1168, %v1166
    %v1289 = vpack.c.b16 %v1169, %v1167
    %v1290 = vpack.c.b16 %v1172, %v1170
    %v1291 = vpack.c.b16 %v1173, %v1171
    %v1292 = vpack.c.b16 %v1176, %v1174
    %v1293 = vpack.c.b16 %v1177, %v1175
    %v1294 = vpack.c.b16 %v1180, %v1178
    %v1295 = vpack.c.b16 %v1181, %v1179
    %v1296 = vpack.c.b16 %v1184, %v1182
    %v1297 = vpack.c.b16 %v1185, %v1183
    %v1298 = vpack.c.b16 %v1188, %v1186
    %v1299 = vpack.c.b16 %v1189, %v1187
    %v1300 = vpack.c.b16 %v1192, %v1190
    %v1301 = vpack.c.b16 %v1193, %v1191
    %v1302 = vpack.c.b16 %v1196, %v1194
    %v1303 = vpack.c.b16 %v1197, %v1195
    %v1304 = vpack.c.b16 %v1200, %v1198
    %v1305 = vpack.c.b16 %v1201, %v1199
    %v1306 = vpack.c.b16 %v1204, %v1202
    %v1307 = vpack.c.b16 %v1205, %v1203
    %v1308 = vpack.c.b16 %v1208, %v1206
    %v1309 = vpack.c.b16 %v1209, %v1207
    %v1310 = vpack.c.b16 %v1212, %v1210
    %v1311 = vpack.c.b16 %v1213, %v1211
    %v1312 = vpack.c.b16 %v1216, %v1214
    %v1313 = vpack.c.b16 %v1217, %v1215
    %v1314 = vpack.c.b16 %v1220, %v1218
    %v1315 = vpack.c.b16 %v1221, %v1219
    %v1316 = vpack.c.b16 %v1224, %v1222
    %v1317 = vpack.c.b16 %v1225, %v1223
    %v1318 = vpack.c.b16 %v1228, %v1226
    %v1319 = vpack.c.b16 %v1229, %v1227
    %v1320 = vpack.c.b16 %v1232, %v1230
    %v1321 = vpack.c.b16 %v1233, %v1231
    %v1322 = vpack.c.b16 %v1236, %v1234
    %v1323 = vpack.c.b16 %v1237, %v1235
    %v1324 = vpack.c.b16 %v1240, %v1238
    %v1325 = vpack.c.b16 %v1241, %v1239
    %v1326 = vpack.c.b16 %v1244, %v1242
    %v1327 = vpack.c.b16 %v1245, %v1243
    %v1328 = vpack.c.b16 %v1248, %v1246
    %v1329 = vpack.c.b16 %v1249, %v1247
    %v1330 = vpack.c.b16 %v1252, %v1250
    %v1331 = vpack.c.b16 %v1253, %v1251
    %v1332 = vpack.c.b16 %v1256, %v1254
    %v1333 = vpack.c.b16 %v1257, %v1255
    %v1334 = vpack.c.b16 %v1260, %v1258
    %v1335 = vpack.c.b16 %v1261, %v1259
    %v1336 = vpack.c.b16 %v1264, %v1262
    %v1337 = vpack.c.b16 %v1265, %v1263
    %v1338 = vpack.c.b16 %v1268, %v1266
    %v1339 = vpack.c.b16 %v1269, %v1267
    %v1340 = vpack.c.b16 %v1272, %v1270
    %v1341 = vpack.c.b16 %v1273, %v1271
    %v1342 = vpack.c.b16 %v1276, %v1274
    %v1343 = vpack.c.b16 %v1277, %v1275
    %v1344 = vpack.c.b16 %v1280, %v1278
    %v1345 = vpack.c.b16 %v1281, %v1279
    %1410 = vmatprep.subr.bf16.mxu0 %v1283
    %1411 = vmatpush1.bf16.msra.mxu0 %v1282
    %1412 = vmatprep.subr.bf16.mxu0 %v1285
    %1413 = vmatpush1.bf16.msra.mxu0 %v1284
    %1414 = vmatprep.subr.bf16.mxu0 %v1287
    %1415 = vmatpush1.bf16.msra.mxu0 %v1286
    %1416 = vmatprep.subr.bf16.mxu0 %v1289
    %1417 = vmatpush1.bf16.msra.mxu0 %v1288
    %1418 = vmatprep.subr.bf16.mxu0 %v1291
    %1419 = vmatpush1.bf16.msra.mxu0 %v1290
    %1420 = vmatprep.subr.bf16.mxu0 %v1293
    %1421 = vmatpush1.bf16.msra.mxu0 %v1292
    %1422 = vmatprep.subr.bf16.mxu0 %v1295
    %1423 = vmatpush1.bf16.msra.mxu0 %v1294
    %1424 = vmatprep.subr.bf16.mxu0 %v1297
    %1425 = vmatpush1.bf16.msra.mxu0 %v1296
    %1426 = vmatprep.subr.bf16.mxu0 %v1299
    %1427 = vmatpush1.bf16.msra.mxu0 %v1298
    %1428 = vmatprep.subr.bf16.mxu0 %v1301
    %1429 = vmatpush1.bf16.msra.mxu0 %v1300
    %1430 = vmatprep.subr.bf16.mxu0 %v1303
    %1431 = vmatpush1.bf16.msra.mxu0 %v1302
    %1432 = vmatprep.subr.bf16.mxu0 %v1305
    %1433 = vmatpush1.bf16.msra.mxu0 %v1304
    %1434 = vmatprep.subr.bf16.mxu0 %v1307
    %1435 = vmatpush1.bf16.msra.mxu0 %v1306
    %1436 = vmatprep.subr.bf16.mxu0 %v1309
    %1437 = vmatpush1.bf16.msra.mxu0 %v1308
    %1438 = vmatprep.subr.bf16.mxu0 %v1311
    %1439 = vmatpush1.bf16.msra.mxu0 %v1310
    %1440 = vmatprep.subr.bf16.mxu0 %v1313
    %1441 = vmatpush1.bf16.msra.mxu0 %v1312
    %1442 = vmatprep.mubr.bf16.mxu0 %v1083
    %1443 = vmatmul.mubr.bf16.gmra.mrb[0].mxu0 %v1082
    %v1444 = vpop.f32.mrb[0].mxu0
    %v1445 = vadd.f32 %v976, %v1444
    %v1446 = vpop.f32.mrb[0].mxu0
    %v1447 = vadd.f32 %v980, %v1446
    %v1448 = vpop.f32.mrb[0].mxu0
    %v1449 = vpop.f32.mrb[0].mxu0
    %1450 = vdwg.mxu0
    %1451 = vmatprep.subr.bf16.mxu0 %v1315
    %1452 = vmatpush1.bf16.msra.mxu0 %v1314
    %1453 = vmatprep.subr.bf16.mxu0 %v1317
    %1454 = vmatpush1.bf16.msra.mxu0 %v1316
    %1455 = vmatprep.subr.bf16.mxu0 %v1319
    %1456 = vmatpush1.bf16.msra.mxu0 %v1318
    %1457 = vmatprep.subr.bf16.mxu0 %v1321
    %1458 = vmatpush1.bf16.msra.mxu0 %v1320
    %1459 = vmatprep.subr.bf16.mxu0 %v1323
    %1460 = vmatpush1.bf16.msra.mxu0 %v1322
    %1461 = vmatprep.subr.bf16.mxu0 %v1325
    %1462 = vmatpush1.bf16.msra.mxu0 %v1324
    %1463 = vmatprep.subr.bf16.mxu0 %v1327
    %1464 = vmatpush1.bf16.msra.mxu0 %v1326
    %1465 = vmatprep.subr.bf16.mxu0 %v1329
    %1466 = vmatpush1.bf16.msra.mxu0 %v1328
    %1467 = vmatprep.subr.bf16.mxu0 %v1331
    %1468 = vmatpush1.bf16.msra.mxu0 %v1330
    %1469 = vmatprep.subr.bf16.mxu0 %v1333
    %1470 = vmatpush1.bf16.msra.mxu0 %v1332
    %1471 = vmatprep.subr.bf16.mxu0 %v1335
    %1472 = vmatpush1.bf16.msra.mxu0 %v1334
    %1473 = vmatprep.subr.bf16.mxu0 %v1337
    %1474 = vmatpush1.bf16.msra.mxu0 %v1336
    %1475 = vmatprep.subr.bf16.mxu0 %v1339
    %1476 = vmatpush1.bf16.msra.mxu0 %v1338
    %1477 = vmatprep.subr.bf16.mxu0 %v1341
    %1478 = vmatpush1.bf16.msra.mxu0 %v1340
    %1479 = vmatprep.subr.bf16.mxu0 %v1343
    %1480 = vmatpush1.bf16.msra.mxu0 %v1342
    %1481 = vmatprep.subr.bf16.mxu0 %v1345
    %1482 = vmatpush1.bf16.msra.mxu0 %v1344
    %1483 = vmatprep.mubr.bf16.mxu0 %v1085
    %1484 = vmatmul.mubr.bf16.gmra.mrb[0].mxu0 %v1084
    %v1485 = vpop.f32.mrb[0].mxu0
    %v1486 = vadd.f32 %v1445, %v1485
    %v1487 = vpop.f32.mrb[0].mxu0
    %v1488 = vadd.f32 %v1447, %v1487
    %v1489 = vpop.f32.mrb[0].mxu0
    %v1490 = vpop.f32.mrb[0].mxu0
    %1491 = vdwg.mxu0
    %1492 = vst [vmem:[#allocation11] sm:$0xff] %v1486
    %1493 = vst [vmem:[#allocation11 + $0x8] sm:$0xff] %v1488
    %v1494 = vpack.c.bf16 %v1486, %v1486
    %v1495 = vpack.c.bf16 %v1488, %v1488
    %v1496 = vld [vmem:[#allocation8] sm:$0xf]
    %v1497 = vld [vmem:[#allocation8 + $0x4] sm:$0xf]
    %v1498 = vld [vmem:[#allocation8 + $0x8] sm:$0xf]
    %v1499 = vld [vmem:[#allocation8 + $0xc] sm:$0xf]
    %v1500 = vld [vmem:[#allocation8 + $0x10] sm:$0xf]
    %v1501 = vld [vmem:[#allocation8 + $0x14] sm:$0xf]
    %v1502 = vld [vmem:[#allocation8 + $0x18] sm:$0xf]
    %v1503 = vld [vmem:[#allocation8 + $0x1c] sm:$0xf]
    %v1504 = vld [vmem:[#allocation8 + $0x20] sm:$0xf]
    %v1505 = vld [vmem:[#allocation8 + $0x24] sm:$0xf]
    %v1506 = vld [vmem:[#allocation8 + $0x28] sm:$0xf]
    %v1507 = vld [vmem:[#allocation8 + $0x2c] sm:$0xf]
    %v1508 = vld [vmem:[#allocation8 + $0x30] sm:$0xf]
    %v1509 = vld [vmem:[#allocation8 + $0x34] sm:$0xf]
    %v1510 = vld [vmem:[#allocation8 + $0x38] sm:$0xf]
    %v1511 = vld [vmem:[#allocation8 + $0x3c] sm:$0xf]
    %v1512 = vld [vmem:[#allocation8 + $0x40] sm:$0xf]
    %v1513 = vld [vmem:[#allocation8 + $0x44] sm:$0xf]
    %v1514 = vld [vmem:[#allocation8 + $0x48] sm:$0xf]
    %v1515 = vld [vmem:[#allocation8 + $0x4c] sm:$0xf]
    %v1516 = vld [vmem:[#allocation8 + $0x50] sm:$0xf]
    %v1517 = vld [vmem:[#allocation8 + $0x54] sm:$0xf]
    %v1518 = vld [vmem:[#allocation8 + $0x58] sm:$0xf]
    %v1519 = vld [vmem:[#allocation8 + $0x5c] sm:$0xf]
    %v1520 = vld [vmem:[#allocation8 + $0x60] sm:$0xf]
    %v1521 = vld [vmem:[#allocation8 + $0x64] sm:$0xf]
    %v1522 = vld [vmem:[#allocation8 + $0x68] sm:$0xf]
    %v1523 = vld [vmem:[#allocation8 + $0x6c] sm:$0xf]
    %v1524 = vld [vmem:[#allocation8 + $0x70] sm:$0xf]
    %v1525 = vld [vmem:[#allocation8 + $0x74] sm:$0xf]
    %v1526 = vld [vmem:[#allocation8 + $0x78] sm:$0xf]
    %v1527 = vld [vmem:[#allocation8 + $0x7c] sm:$0xf]
    %v1528 = vld [vmem:[#allocation10] sm:$0x1]
    %v1530 = vlaneseq
    %v1531 = vshrl.u32 %v1530, 7
    %v1532 = vsub.s32 0, %v1531
    %v1533 = vrot.slane %v1528, %v1532
    %v1567 = vunpack.c.l.b16 %v1496
    %v1568 = vunpack.c.l.b16 %v1497
    %v1569 = vunpack.c.l.b16 %v1498
    %v1570 = vunpack.c.l.b16 %v1499
    %v1571 = vunpack.c.l.b16 %v1500
    %v1572 = vunpack.c.l.b16 %v1501
    %v1573 = vunpack.c.l.b16 %v1502
    %v1574 = vunpack.c.l.b16 %v1503
    %v1575 = vunpack.c.l.b16 %v1504
    %v1576 = vunpack.c.l.b16 %v1505
    %v1577 = vunpack.c.l.b16 %v1506
    %v1578 = vunpack.c.l.b16 %v1507
    %v1579 = vunpack.c.l.b16 %v1508
    %v1580 = vunpack.c.l.b16 %v1509
    %v1581 = vunpack.c.l.b16 %v1510
    %v1582 = vunpack.c.l.b16 %v1511
    %v1583 = vunpack.c.l.b16 %v1512
    %v1584 = vunpack.c.l.b16 %v1513
    %v1585 = vunpack.c.l.b16 %v1514
    %v1586 = vunpack.c.l.b16 %v1515
    %v1587 = vunpack.c.l.b16 %v1516
    %v1588 = vunpack.c.l.b16 %v1517
    %v1589 = vunpack.c.l.b16 %v1518
    %v1590 = vunpack.c.l.b16 %v1519
    %v1591 = vunpack.c.l.b16 %v1520
    %v1592 = vunpack.c.l.b16 %v1521
    %v1593 = vunpack.c.l.b16 %v1522
    %v1594 = vunpack.c.l.b16 %v1523
    %v1595 = vunpack.c.l.b16 %v1524
    %v1596 = vunpack.c.l.b16 %v1525
    %v1597 = vunpack.c.l.b16 %v1526
    %v1598 = vunpack.c.l.b16 %v1527
    %v1599 = vpack.c.b16 %v1568, %v1567
    %v1600 = vpack.c.b16 %v1570, %v1569
    %v1601 = vpack.c.b16 %v1572, %v1571
    %v1602 = vpack.c.b16 %v1574, %v1573
    %v1603 = vpack.c.b16 %v1576, %v1575
    %v1604 = vpack.c.b16 %v1578, %v1577
    %v1605 = vpack.c.b16 %v1580, %v1579
    %v1606 = vpack.c.b16 %v1582, %v1581
    %v1607 = vpack.c.b16 %v1584, %v1583
    %v1608 = vpack.c.b16 %v1586, %v1585
    %v1609 = vpack.c.b16 %v1588, %v1587
    %v1610 = vpack.c.b16 %v1590, %v1589
    %v1611 = vpack.c.b16 %v1592, %v1591
    %v1612 = vpack.c.b16 %v1594, %v1593
    %v1613 = vpack.c.b16 %v1596, %v1595
    %v1614 = vpack.c.b16 %v1598, %v1597
    %1631 = vmatprep.subr.bf16.mxu0 0
    %1632 = vmatpush1.bf16.msra.mxu0 %v1599
    %1633 = vmatprep.subr.bf16.mxu0 0
    %1634 = vmatpush1.bf16.msra.mxu0 %v1600
    %1635 = vmatprep.subr.bf16.mxu0 0
    %1636 = vmatpush1.bf16.msra.mxu0 %v1601
    %1637 = vmatprep.subr.bf16.mxu0 0
    %1638 = vmatpush1.bf16.msra.mxu0 %v1602
    %1639 = vmatprep.subr.bf16.mxu0 0
    %1640 = vmatpush1.bf16.msra.mxu0 %v1603
    %1641 = vmatprep.subr.bf16.mxu0 0
    %1642 = vmatpush1.bf16.msra.mxu0 %v1604
    %1643 = vmatprep.subr.bf16.mxu0 0
    %1644 = vmatpush1.bf16.msra.mxu0 %v1605
    %1645 = vmatprep.subr.bf16.mxu0 0
    %1646 = vmatpush1.bf16.msra.mxu0 %v1606
    %1647 = vmatprep.subr.bf16.mxu0 0
    %1648 = vmatpush1.bf16.msra.mxu0 %v1607
    %1649 = vmatprep.subr.bf16.mxu0 0
    %1650 = vmatpush1.bf16.msra.mxu0 %v1608
    %1651 = vmatprep.subr.bf16.mxu0 0
    %1652 = vmatpush1.bf16.msra.mxu0 %v1609
    %1653 = vmatprep.subr.bf16.mxu0 0
    %1654 = vmatpush1.bf16.msra.mxu0 %v1610
    %1655 = vmatprep.subr.bf16.mxu0 0
    %1656 = vmatpush1.bf16.msra.mxu0 %v1611
    %1657 = vmatprep.subr.bf16.mxu0 0
    %1658 = vmatpush1.bf16.msra.mxu0 %v1612
    %1659 = vmatprep.subr.bf16.mxu0 0
    %1660 = vmatpush1.bf16.msra.mxu0 %v1613
    %1661 = vmatprep.subr.bf16.mxu0 0
    %1662 = vmatpush1.bf16.msra.mxu0 %v1614
    %1663 = vmatprep.mubr.bf16.mxu0 %v1495
    %1664 = vmatmul.mubr.bf16.gmra.mrb[0].mxu0 %v1494
    %v1665 = vpop.f32.mrb[0].mxu0
    %v1666 = vadd.f32 %v1533, %v1665
    %v1667 = vpop.f32.mrb[0].mxu0
    %v1668 = vpop.f32.mrb[0].mxu0
    %v1669 = vpop.f32.mrb[0].mxu0
    %1670 = vdwg.mxu0
    %1671 = vst [vmem:[#allocation12] sm:$0xff] %v1666
    // Predicated region
    $region42: #{tpu_custom_call.1} parent=1 // pred_check
      _
    $region43: #{tpu_custom_call.1} parent=1 // pred_check_branch
      %1673 = sbr.rel (0) target = $region45
    $region44: #{tpu_custom_call.1} parent=1 // pred_region
      %s1675 = ssub.s32 256, 256
      %1676 = vsyncadd [#allocation4], %s1675
      %s1678 = sshll.u32 [#allocation11], 4
      %s1679 = int_to_ptr.vmem [resolvable:$true] %s1678
      %1681 = dma.vmem_to_hbm [thread:$0]  %s1679, 256, %s5, [#allocation4]
    $region45: #{tpu_custom_call.1} parent=1 // pred_fallthru
      _
    // Predicated region
    $region46: #{tpu_custom_call.1} parent=1 // pred_check
      _
    $region47: #{tpu_custom_call.1} parent=1 // pred_check_branch
      %1683 = sbr.rel (0) target = $region49
    $region48: #{tpu_custom_call.1} parent=1 // pred_region
      %s1685 = ssub.s32 128, 128
      %1686 = vsyncadd [#allocation13], %s1685
      %s1688 = sshll.u32 [#allocation12], 4
      %s1689 = int_to_ptr.vmem [resolvable:$true] %s1688
      %1691 = dma.vmem_to_hbm [thread:$0]  %s1689, 128, %s6, [#allocation13]
    $region49: #{tpu_custom_call.1} parent=1 // pred_fallthru
      _
    // Predicated region
    $region50: #{tpu_custom_call.1} parent=1 // pred_check
      _
    $region51: #{tpu_custom_call.1} parent=1 // pred_check_branch
      %1693 = sbr.rel (0) target = $region53
    $region52: #{tpu_custom_call.1} parent=1 // pred_region
      %1694 = dma.done [#allocation4], 256
    $region53: #{tpu_custom_call.1} parent=1 // pred_fallthru
      _
    // Predicated region
    $region54: #{tpu_custom_call.1} parent=1 // pred_check
      _
    $region55: #{tpu_custom_call.1} parent=1 // pred_check_branch
      %1696 = sbr.rel (0) target = $region57
    $region56: #{tpu_custom_call.1} parent=1 // pred_region
      %1697 = dma.done [#allocation13], 128
    $region57: #{tpu_custom_call.1} parent=1 // pred_fallthru
      _
    %1698 = vsyncpa [#allocation3], 1
    %1699 = vsyncpa [#allocation6], 1
    %1700 = vsyncpa [#allocation9], 1
    %1701 = vsyncpa [#allocation4], 1
    %1702 = vsyncpa [#allocation13], 1

</llo_original>
